<compile_context>
chip_gen: v5e
topology: v5e:2x2
jax: 0.10.0
libtpu: 0.0.40
codegen_flags: <defaults>
</compile_context>

<pallas_src>
import functools
import math

import jax
import jax.numpy as jnp
from jax.experimental import pallas as pl
from jax.experimental.pallas import tpu as pltpu


def conv_relu6_kernel(xflat_ref, w_ref, b_ref, o_ref, xcol_ref,
                      *, wp, m, n_kh, n_kw, c_in):
    # xflat_ref: (C_in, LFLAT)        flattened zero-padded input (WP cols/row)
    # w_ref:     (C_out, KH*KW*C_in)  merged weight matrix (tap-major columns)
    # b_ref:     (C_out, 1)
    # o_ref:     (C_out, M)           lane-dense, M = 128-aligned
    # xcol_ref:  (KH*KW*C_in, M)      VMEM scratch: stacked tap slices (im2col)
    for t in range(n_kh * n_kw):
        r, c = t // n_kw, t % n_kw
        off = r * wp + c                                 # static lane offset of this tap
        xcol_ref[t * c_in:(t + 1) * c_in, :] = xflat_ref[:, off:off + m]
    acc = jnp.dot(w_ref[...], xcol_ref[...],             # single K=KH*KW*C_in matmul
                  preferred_element_type=jnp.float32)
    acc = acc + b_ref[...]                               # bias broadcast over lanes
    o_ref[...] = jnp.clip(acc, 0.0, 6.0).astype(o_ref.dtype)   # ReLU6


def conv2d_relu6(x, weight, bias):
    """x: (1, C_in, H, W) NCHW; weight: (C_out, C_in, 2, 2) OIHW; bias: (C_out,)."""
    N, C_in, H, W = x.shape
    C_out, C_in_w, KH, KW = weight.shape
    assert N == 1 and C_in == C_in_w   # TODO(synk): fold batch>1 into a parallel grid axis
    PAD = 1
    OH = H + 2 * PAD - KH + 1
    OW = W + 2 * PAD - KW + 1
    HP, WP = H + 2 * PAD, W + 2 * PAD
    M = OH * WP                                   # valid output lanes (incl. wrap column)
    M_PAD = ((M + 127) // 128) * 128              # 128-align lane dim -> unmasked stores
    # Flat padded length must keep every tap slice in-bounds for M_PAD lanes.
    lflat_needed = (KH - 1) * WP + (KW - 1) + M_PAD
    extra_rows = max(1, math.ceil((lflat_needed - HP * WP) / WP))
    LFLAT = (HP + extra_rows) * WP

    # ---- host glue: one pad (+ free reshapes) ----
    xflat = jnp.pad(x[0], ((0, 0), (PAD, PAD + extra_rows), (PAD, PAD))).reshape(C_in, LFLAT)
    # w2d[co, (r*KW + c)*C_in + ci] = weight[co, ci, r, c]  (matches xcol row layout)
    w2d = jnp.transpose(weight, (0, 2, 3, 1)).reshape(C_out, KH * KW * C_in)
    b_col = bias.reshape(C_out, 1)

    kernel = functools.partial(conv_relu6_kernel, wp=WP, m=M_PAD,
                               n_kh=KH, n_kw=KW, c_in=C_in)

    flops = 2 * (KH * KW * C_in) * C_out * M_PAD
    bytes_accessed = 4 * (xflat.size + w2d.size + b_col.size + C_out * M_PAD)

    out_flat = pl.pallas_call(
        kernel,
        out_shape=jax.ShapeDtypeStruct((C_out, M_PAD), jnp.float32),
        grid=(1,),
        in_specs=[
            pl.BlockSpec((C_in, LFLAT), lambda i: (0, 0)),
            pl.BlockSpec((C_out, KH * KW * C_in), lambda i: (0, 0)),
            pl.BlockSpec((C_out, 1), lambda i: (0, 0)),
        ],
        out_specs=pl.BlockSpec((C_out, M_PAD), lambda i: (0, 0)),
        scratch_shapes=[pltpu.VMEM((KH * KW * C_in, M_PAD), jnp.float32)],
        compiler_params=pltpu.CompilerParams(
            dimension_semantics=("arbitrary",),
            allow_input_fusion=[True, False, False]),
        cost_estimate=pl.CostEstimate(
            flops=flops, transcendentals=0, bytes_accessed=bytes_accessed),
    )(xflat, w2d, b_col)

    # (C_out, M_PAD) -> drop alignment lanes -> (C_out, OH, WP) -> drop wrap column -> NCHW
    return out_flat[:, :M].reshape(C_out, OH, WP)[:, :, :OW][None]


def reference(x, weight, bias):
    y = jax.lax.conv_general_dilated(
        x, weight, window_strides=(1, 1), padding=((1, 1), (1, 1)),
        dimension_numbers=("NCHW", "OIHW", "NCHW"))
    y = y + bias.reshape(1, -1, 1, 1)
    return jnp.clip(y, 0.0, 6.0)


if __name__ == "__main__":
    key = jax.random.PRNGKey(0)
    kx, kw_, kb = jax.random.split(key, 3)

    # Shapes implied by the module: Conv2d(48, 48, 2, stride=1, padding=1) on (1, 48, 32, 32).
    C_IN, C_OUT, H, W = 48, 48, 32, 32
    x = jax.random.normal(kx, (1, C_IN, H, W), dtype=jnp.float32)
    weight = 0.1 * jax.random.normal(kw_, (C_OUT, C_IN, 2, 2), dtype=jnp.float32)
    bias = 0.1 * jax.random.normal(kb, (C_OUT,), dtype=jnp.float32)

    out = jax.block_until_ready(conv2d_relu6(x, weight, bias))
    ref = jax.block_until_ready(reference(x, weight, bias))

    assert out.shape == (1, C_OUT, H + 1, W + 1), out.shape
    assert jnp.allclose(out, ref, atol=1e-4, rtol=1e-4), \
        float(jnp.max(jnp.abs(out - ref)))

    print("KERNEL_OK")
</pallas_src>

<mosaic_0001>
module attributes {stable_mosaic.version = 11 : i64} {
  func.func @conv_relu6_kernel(%arg0: i32, %arg1: memref<48x1190xf32, #tpu.memory_space<vmem>>, %arg2: memref<48x192xf32, #tpu.memory_space<vmem>>, %arg3: memref<48x1xf32, #tpu.memory_space<vmem>>, %arg4: memref<48x1152xf32, #tpu.memory_space<vmem>>, %arg5: memref<192x1152xf32, #tpu.memory_space<vmem>>) attributes {dimension_semantics = [#tpu.dimension_semantics<arbitrary>], iteration_bounds = array<i64: 1>, scalar_prefetch = 0 : i64, scratch_operands = 1 : i64, tpu.core_type = #tpu.core_type<tc>, window_params = [{pipeline_mode = #tpu.pipeline_mode<synchronous>, transform_indices = @transform_0, window_bounds = array<i64: 48, 1190>}, {pipeline_mode = #tpu.pipeline_mode<synchronous>, transform_indices = @transform_1, window_bounds = array<i64: 48, 192>}, {pipeline_mode = #tpu.pipeline_mode<synchronous>, transform_indices = @transform_2, window_bounds = array<i64: 48, 1>}, {pipeline_mode = #tpu.pipeline_mode<synchronous>, transform_indices = @transform_3, window_bounds = array<i64: 48, 1152>}]} {
    %c0 = arith.constant 0 : index
    %c0_0 = arith.constant 0 : index
    %0 = vector.load %arg1[%c0, %c0_0] : memref<48x1190xf32, #tpu.memory_space<vmem>>, vector<48x1152xf32>
    %c0_1 = arith.constant 0 : index
    %c0_2 = arith.constant 0 : index
    %1 = vector.load %arg5[%c0_1, %c0_2] : memref<192x1152xf32, #tpu.memory_space<vmem>>, vector<48x1152xf32>
    tpu.vector_store %arg5[%c0_1, %c0_2], %0 {strides = array<i32>} : memref<192x1152xf32, #tpu.memory_space<vmem>>, vector<48x1152xf32>,
    %c0_3 = arith.constant 0 : index
    %c1 = arith.constant 1 : index
    %2 = vector.load %arg1[%c0_3, %c1] : memref<48x1190xf32, #tpu.memory_space<vmem>>, vector<48x1152xf32>
    %c48 = arith.constant 48 : index
    %c0_4 = arith.constant 0 : index
    %3 = vector.load %arg5[%c48, %c0_4] : memref<192x1152xf32, #tpu.memory_space<vmem>>, vector<48x1152xf32>
    tpu.vector_store %arg5[%c48, %c0_4], %2 {strides = array<i32>} : memref<192x1152xf32, #tpu.memory_space<vmem>>, vector<48x1152xf32>,
    %c0_5 = arith.constant 0 : index
    %c34 = arith.constant 34 : index
    %4 = vector.load %arg1[%c0_5, %c34] : memref<48x1190xf32, #tpu.memory_space<vmem>>, vector<48x1152xf32>
    %c96 = arith.constant 96 : index
    %c0_6 = arith.constant 0 : index
    %5 = vector.load %arg5[%c96, %c0_6] : memref<192x1152xf32, #tpu.memory_space<vmem>>, vector<48x1152xf32>
    tpu.vector_store %arg5[%c96, %c0_6], %4 {strides = array<i32>} : memref<192x1152xf32, #tpu.memory_space<vmem>>, vector<48x1152xf32>,
    %c0_7 = arith.constant 0 : index
    %c35 = arith.constant 35 : index
    %6 = vector.load %arg1[%c0_7, %c35] : memref<48x1190xf32, #tpu.memory_space<vmem>>, vector<48x1152xf32>
    %c144 = arith.constant 144 : index
    %c0_8 = arith.constant 0 : index
    %7 = vector.load %arg5[%c144, %c0_8] : memref<192x1152xf32, #tpu.memory_space<vmem>>, vector<48x1152xf32>
    tpu.vector_store %arg5[%c144, %c0_8], %6 {strides = array<i32>} : memref<192x1152xf32, #tpu.memory_space<vmem>>, vector<48x1152xf32>,
    %c0_9 = arith.constant 0 : index
    %c0_10 = arith.constant 0 : index
    %8 = vector.load %arg2[%c0_9, %c0_10] : memref<48x192xf32, #tpu.memory_space<vmem>>, vector<48x192xf32>
    %c0_11 = arith.constant 0 : index
    %c0_12 = arith.constant 0 : index
    %9 = vector.load %arg5[%c0_11, %c0_12] : memref<192x1152xf32, #tpu.memory_space<vmem>>, vector<192x1152xf32>
    %cst = arith.constant dense<0.000000e+00> : vector<48x1152xf32>
    %10 = tpu.matmul %8, %9, %cst {dimension_numbers = #tpu.dot_dimension_numbers<[1], [0], [0], [1], [0, 0, 1, 1], [], []>} : vector<48x192xf32>, vector<192x1152xf32>, vector<48x1152xf32> -> vector<48x1152xf32>
    %c0_13 = arith.constant 0 : index
    %c0_14 = arith.constant 0 : index
    %11 = vector.load %arg3[%c0_13, %c0_14] : memref<48x1xf32, #tpu.memory_space<vmem>>, vector<48x1xf32>
    %12 = vector.broadcast %11 : vector<48x1xf32> to vector<48x1152xf32>
    %13 = arith.addf %10, %12 : vector<48x1152xf32>
    %cst_15 = arith.constant 0.000000e+00 : f32
    %cst_16 = arith.constant 6.000000e+00 : f32
    %14 = vector.broadcast %cst_15 : f32 to vector<48x1152xf32>
    %15 = arith.maximumf %14, %13 : vector<48x1152xf32>
    %16 = vector.broadcast %cst_16 : f32 to vector<48x1152xf32>
    %17 = arith.minimumf %16, %15 : vector<48x1152xf32>
    %c0_17 = arith.constant 0 : index
    %c0_18 = arith.constant 0 : index
    %18 = vector.load %arg4[%c0_17, %c0_18] : memref<48x1152xf32, #tpu.memory_space<vmem>>, vector<48x1152xf32>
    tpu.vector_store %arg4[%c0_17, %c0_18], %17 {strides = array<i32>} : memref<48x1152xf32, #tpu.memory_space<vmem>>, vector<48x1152xf32>,
    return
  }
  func.func @transform_0(%arg0: i32) -> (i32, i32) {
    %c0_i32 = arith.constant 0 : i32
    %c0_i32_0 = arith.constant 0 : i32
    %c0_i32_1 = arith.constant 0 : i32
    return %c0_i32, %c0_i32_0 : i32, i32
  }
  func.func @transform_1(%arg0: i32) -> (i32, i32) {
    %c0_i32 = arith.constant 0 : i32
    %c0_i32_0 = arith.constant 0 : i32
    %c0_i32_1 = arith.constant 0 : i32
    return %c0_i32, %c0_i32_0 : i32, i32
  }
  func.func @transform_2(%arg0: i32) -> (i32, i32) {
    %c0_i32 = arith.constant 0 : i32
    %c0_i32_0 = arith.constant 0 : i32
    %c0_i32_1 = arith.constant 0 : i32
    return %c0_i32, %c0_i32_0 : i32, i32
  }
  func.func @transform_3(%arg0: i32) -> (i32, i32) {
    %c0_i32 = arith.constant 0 : i32
    %c0_i32_0 = arith.constant 0 : i32
    %c0_i32_1 = arith.constant 0 : i32
    return %c0_i32, %c0_i32_0 : i32, i32
  }
}

</mosaic_0001>

<llo_original>
// kernel: tpu_custom_call.1
$region0: #{tpu_custom_call.1}
  #allocation0 [shape = 'u32[]', space=smem, size = 0x4, offset = 0x4, fixed_abs, tag = 'smem constant byte address 0x4 - core index']
  #allocation1 [shape = 'u32[72,128]{1,0:T(1,128)}', space=vmem, size = 0x9000, scoped, tag = 'internal scratch']
  #allocation2 [shape = 'f32[192,1152]{1,0:T(8,128)}', space=vmem, size = 0xd8000, scoped, tag = 'scratch operand']
  %s0 = inlined_call_operand.hbm [shape: f32[48,1190], index: 0, kind: input, shape index: {}]
  %s1 = inlined_call_operand.hbm [shape: f32[48,192], index: 1, kind: input, shape index: {}]
  %s2 = inlined_call_operand.vmem [shape: f32[48,1], index: 2, kind: input, shape index: {}]
  %s3 = inlined_call_operand.hbm [shape: f32[48,1152], index: 3, kind: output, shape index: {}]
  %s4 = sld [smem:[#allocation0]]
  $region30: #{tpu_custom_call.1} parent=0
    _
  %s6 = ssub.s32 1, %s4
  %s7 = scalar_select 0, %s6, %s4
  $region1: #{tpu_custom_call.1} parent=0
    #allocation3 [shape = 'u8[245760]{0}', space=vmem, size = 0x3c000, scoped, tag = 'input window, operand 0, single buffered']
    #allocation4 [shape = 's32[1]{0}', space=sflag, size = 0x4, scoped, tag = 'scoped memory for tpu_custom_call.1']
    #allocation5 [shape = 's32[1]{0}', space=sflag, size = 0x4, scoped, tag = 'scoped memory for tpu_custom_call.1']
    #allocation6 [shape = 'u8[49152]{0}', space=vmem, size = 0xc000, scoped, tag = 'input window, operand 1, single buffered']
    #allocation7 [shape = 's32[1]{0}', space=sflag, size = 0x4, scoped, tag = 'scoped memory for tpu_custom_call.1']
    #allocation8 [shape = 'u8[221184]{0}', space=vmem, size = 0x36000, scoped, tag = 'output window, operand 0, single buffered']
    %8 = vsyncpa [#allocation4], 0
    %9 = vsyncpa [#allocation7], 0
    %10 = vsyncpa [#allocation5], 0
    // Predicated region
    $region2: #{tpu_custom_call.1} parent=1 // pred_check
      _
    $region3: #{tpu_custom_call.1} parent=1 // pred_check_branch
      %12 = sbr.rel (0) target = $region5
    $region4: #{tpu_custom_call.1} parent=1 // pred_region
      %14 = vsyncadd [#allocation4], 0
      %s15 = sshll.u32 %s0, 4
      %s16 = int_to_ptr.hbm [resolvable:$true] %s15
      %s17 = sshll.u32 [#allocation3], 4
      %s18 = int_to_ptr.vmem [resolvable:$true] %s17
      %23 = dma.hbm_to_vmem [thread:$0]  %s16, 7680, %s18, [#allocation4], 1280, 1280, 80
    $region5: #{tpu_custom_call.1} parent=1 // pred_fallthru
      _
    // Predicated region
    $region6: #{tpu_custom_call.1} parent=1 // pred_check
      _
    $region7: #{tpu_custom_call.1} parent=1 // pred_check_branch
      %25 = sbr.rel (0) target = $region9
    $region8: #{tpu_custom_call.1} parent=1 // pred_region
      %27 = vsyncadd [#allocation7], 0
      %s28 = sshll.u32 %s1, 4
      %s29 = int_to_ptr.hbm [resolvable:$true] %s28
      %s30 = sshll.u32 [#allocation6], 4
      %s31 = int_to_ptr.vmem [resolvable:$true] %s30
      %36 = dma.hbm_to_vmem [thread:$0]  %s29, 1536, %s31, [#allocation7], 256, 256, 16
    $region9: #{tpu_custom_call.1} parent=1 // pred_fallthru
      _
    // Predicated region
    $region10: #{tpu_custom_call.1} parent=1 // pred_check
      _
    $region11: #{tpu_custom_call.1} parent=1 // pred_check_branch
      %38 = sbr.rel (0) target = $region13
    $region12: #{tpu_custom_call.1} parent=1 // pred_region
      _
    $region13: #{tpu_custom_call.1} parent=1 // pred_fallthru
      _
    // Predicated region
    $region14: #{tpu_custom_call.1} parent=1 // pred_check
      _
    $region15: #{tpu_custom_call.1} parent=1 // pred_check_branch
      %40 = sbr.rel (0) target = $region17
    $region16: #{tpu_custom_call.1} parent=1 // pred_region
      %42 = dma.done [#allocation4], 7680
    $region17: #{tpu_custom_call.1} parent=1 // pred_fallthru
      _
    // Predicated region
    $region18: #{tpu_custom_call.1} parent=1 // pred_check
      _
    $region19: #{tpu_custom_call.1} parent=1 // pred_check_branch
      %44 = sbr.rel (0) target = $region21
    $region20: #{tpu_custom_call.1} parent=1 // pred_region
      %46 = dma.done [#allocation7], 1536
    $region21: #{tpu_custom_call.1} parent=1 // pred_fallthru
      _
    %v47 = vld [vmem:[#allocation3] sm:$0xff]
    %v48 = vld [vmem:[#allocation3 + $0x8] sm:$0xff]
    %v49 = vld [vmem:[#allocation3 + $0x10] sm:$0xff]
    %v50 = vld [vmem:[#allocation3 + $0x18] sm:$0xff]
    %v51 = vld [vmem:[#allocation3 + $0x20] sm:$0xff]
    %v52 = vld [vmem:[#allocation3 + $0x28] sm:$0xff]
    %v53 = vld [vmem:[#allocation3 + $0x30] sm:$0xff]
    %v54 = vld [vmem:[#allocation3 + $0x38] sm:$0xff]
    %v55 = vld [vmem:[#allocation3 + $0x40] sm:$0xff]
    %v56 = vld [vmem:[#allocation3 + $0x50] sm:$0xff]
    %v57 = vld [vmem:[#allocation3 + $0x58] sm:$0xff]
    %v58 = vld [vmem:[#allocation3 + $0x60] sm:$0xff]
    %v59 = vld [vmem:[#allocation3 + $0x68] sm:$0xff]
    %v60 = vld [vmem:[#allocation3 + $0x70] sm:$0xff]
    %v61 = vld [vmem:[#allocation3 + $0x78] sm:$0xff]
    %v62 = vld [vmem:[#allocation3 + $0x80] sm:$0xff]
    %v63 = vld [vmem:[#allocation3 + $0x88] sm:$0xff]
    %v64 = vld [vmem:[#allocation3 + $0x90] sm:$0xff]
    %v65 = vld [vmem:[#allocation3 + $0xa0] sm:$0xff]
    %v66 = vld [vmem:[#allocation3 + $0xa8] sm:$0xff]
    %v67 = vld [vmem:[#allocation3 + $0xb0] sm:$0xff]
    %v68 = vld [vmem:[#allocation3 + $0xb8] sm:$0xff]
    %v69 = vld [vmem:[#allocation3 + $0xc0] sm:$0xff]
    %v70 = vld [vmem:[#allocation3 + $0xc8] sm:$0xff]
    %v71 = vld [vmem:[#allocation3 + $0xd0] sm:$0xff]
    %v72 = vld [vmem:[#allocation3 + $0xd8] sm:$0xff]
    %v73 = vld [vmem:[#allocation3 + $0xe0] sm:$0xff]
    %v74 = vld [vmem:[#allocation3 + $0xf0] sm:$0xff]
    %v75 = vld [vmem:[#allocation3 + $0xf8] sm:$0xff]
    %v76 = vld [vmem:[#allocation3 + $0x100] sm:$0xff]
    %v77 = vld [vmem:[#allocation3 + $0x108] sm:$0xff]
    %v78 = vld [vmem:[#allocation3 + $0x110] sm:$0xff]
    %v79 = vld [vmem:[#allocation3 + $0x118] sm:$0xff]
    %v80 = vld [vmem:[#allocation3 + $0x120] sm:$0xff]
    %v81 = vld [vmem:[#allocation3 + $0x128] sm:$0xff]
    %v82 = vld [vmem:[#allocation3 + $0x130] sm:$0xff]
    %v83 = vld [vmem:[#allocation3 + $0x140] sm:$0xff]
    %v84 = vld [vmem:[#allocation3 + $0x148] sm:$0xff]
    %v85 = vld [vmem:[#allocation3 + $0x150] sm:$0xff]
    %v86 = vld [vmem:[#allocation3 + $0x158] sm:$0xff]
    %v87 = vld [vmem:[#allocation3 + $0x160] sm:$0xff]
    %v88 = vld [vmem:[#allocation3 + $0x168] sm:$0xff]
    %v89 = vld [vmem:[#allocation3 + $0x170] sm:$0xff]
    %v90 = vld [vmem:[#allocation3 + $0x178] sm:$0xff]
    %v91 = vld [vmem:[#allocation3 + $0x180] sm:$0xff]
    %v92 = vld [vmem:[#allocation3 + $0x190] sm:$0xff]
    %v93 = vld [vmem:[#allocation3 + $0x198] sm:$0xff]
    %v94 = vld [vmem:[#allocation3 + $0x1a0] sm:$0xff]
    %v95 = vld [vmem:[#allocation3 + $0x1a8] sm:$0xff]
    %v96 = vld [vmem:[#allocation3 + $0x1b0] sm:$0xff]
    %v97 = vld [vmem:[#allocation3 + $0x1b8] sm:$0xff]
    %v98 = vld [vmem:[#allocation3 + $0x1c0] sm:$0xff]
    %v99 = vld [vmem:[#allocation3 + $0x1c8] sm:$0xff]
    %v100 = vld [vmem:[#allocation3 + $0x1d0] sm:$0xff]
    %101 = vst [vmem:[#allocation2] sm:$0xff] %v47
    %102 = vst [vmem:[#allocation2 + $0x8] sm:$0xff] %v48
    %103 = vst [vmem:[#allocation2 + $0x10] sm:$0xff] %v49
    %104 = vst [vmem:[#allocation2 + $0x18] sm:$0xff] %v50
    %105 = vst [vmem:[#allocation2 + $0x20] sm:$0xff] %v51
    %106 = vst [vmem:[#allocation2 + $0x28] sm:$0xff] %v52
    %107 = vst [vmem:[#allocation2 + $0x30] sm:$0xff] %v53
    %108 = vst [vmem:[#allocation2 + $0x38] sm:$0xff] %v54
    %109 = vst [vmem:[#allocation2 + $0x40] sm:$0xff] %v55
    %110 = vst [vmem:[#allocation2 + $0x48] sm:$0xff] %v56
    %111 = vst [vmem:[#allocation2 + $0x50] sm:$0xff] %v57
    %112 = vst [vmem:[#allocation2 + $0x58] sm:$0xff] %v58
    %113 = vst [vmem:[#allocation2 + $0x60] sm:$0xff] %v59
    %114 = vst [vmem:[#allocation2 + $0x68] sm:$0xff] %v60
    %115 = vst [vmem:[#allocation2 + $0x70] sm:$0xff] %v61
    %116 = vst [vmem:[#allocation2 + $0x78] sm:$0xff] %v62
    %117 = vst [vmem:[#allocation2 + $0x80] sm:$0xff] %v63
    %118 = vst [vmem:[#allocation2 + $0x88] sm:$0xff] %v64
    %119 = vst [vmem:[#allocation2 + $0x90] sm:$0xff] %v65
    %120 = vst [vmem:[#allocation2 + $0x98] sm:$0xff] %v66
    %121 = vst [vmem:[#allocation2 + $0xa0] sm:$0xff] %v67
    %122 = vst [vmem:[#allocation2 + $0xa8] sm:$0xff] %v68
    %123 = vst [vmem:[#allocation2 + $0xb0] sm:$0xff] %v69
    %124 = vst [vmem:[#allocation2 + $0xb8] sm:$0xff] %v70
    %125 = vst [vmem:[#allocation2 + $0xc0] sm:$0xff] %v71
    %126 = vst [vmem:[#allocation2 + $0xc8] sm:$0xff] %v72
    %127 = vst [vmem:[#allocation2 + $0xd0] sm:$0xff] %v73
    %128 = vst [vmem:[#allocation2 + $0xd8] sm:$0xff] %v74
    %129 = vst [vmem:[#allocation2 + $0xe0] sm:$0xff] %v75
    %130 = vst [vmem:[#allocation2 + $0xe8] sm:$0xff] %v76
    %131 = vst [vmem:[#allocation2 + $0xf0] sm:$0xff] %v77
    %132 = vst [vmem:[#allocation2 + $0xf8] sm:$0xff] %v78
    %133 = vst [vmem:[#allocation2 + $0x100] sm:$0xff] %v79
    %134 = vst [vmem:[#allocation2 + $0x108] sm:$0xff] %v80
    %135 = vst [vmem:[#allocation2 + $0x110] sm:$0xff] %v81
    %136 = vst [vmem:[#allocation2 + $0x118] sm:$0xff] %v82
    %137 = vst [vmem:[#allocation2 + $0x120] sm:$0xff] %v83
    %138 = vst [vmem:[#allocation2 + $0x128] sm:$0xff] %v84
    %139 = vst [vmem:[#allocation2 + $0x130] sm:$0xff] %v85
    %140 = vst [vmem:[#allocation2 + $0x138] sm:$0xff] %v86
    %141 = vst [vmem:[#allocation2 + $0x140] sm:$0xff] %v87
    %142 = vst [vmem:[#allocation2 + $0x148] sm:$0xff] %v88
    %143 = vst [vmem:[#allocation2 + $0x150] sm:$0xff] %v89
    %144 = vst [vmem:[#allocation2 + $0x158] sm:$0xff] %v90
    %145 = vst [vmem:[#allocation2 + $0x160] sm:$0xff] %v91
    %146 = vst [vmem:[#allocation2 + $0x168] sm:$0xff] %v92
    %147 = vst [vmem:[#allocation2 + $0x170] sm:$0xff] %v93
    %148 = vst [vmem:[#allocation2 + $0x178] sm:$0xff] %v94
    %149 = vst [vmem:[#allocation2 + $0x180] sm:$0xff] %v95
    %150 = vst [vmem:[#allocation2 + $0x188] sm:$0xff] %v96
    %151 = vst [vmem:[#allocation2 + $0x190] sm:$0xff] %v97
    %152 = vst [vmem:[#allocation2 + $0x198] sm:$0xff] %v98
    %153 = vst [vmem:[#allocation2 + $0x1a0] sm:$0xff] %v99
    %154 = vst [vmem:[#allocation2 + $0x1a8] sm:$0xff] %v100
    %v155 = vld [vmem:[#allocation3] sm:$0xff]
    %v156 = vld [vmem:[#allocation3 + $0x8] sm:$0xff]
    %v157 = vld [vmem:[#allocation3 + $0x10] sm:$0xff]
    %v158 = vld [vmem:[#allocation3 + $0x18] sm:$0xff]
    %v159 = vld [vmem:[#allocation3 + $0x20] sm:$0xff]
    %v160 = vld [vmem:[#allocation3 + $0x28] sm:$0xff]
    %v161 = vld [vmem:[#allocation3 + $0x30] sm:$0xff]
    %v162 = vld [vmem:[#allocation3 + $0x38] sm:$0xff]
    %v163 = vld [vmem:[#allocation3 + $0x40] sm:$0xff]
    %v164 = vld [vmem:[#allocation3 + $0x48] sm:$0xff]
    %v165 = vld [vmem:[#allocation3 + $0x50] sm:$0xff]
    %v166 = vld [vmem:[#allocation3 + $0x58] sm:$0xff]
    %v167 = vld [vmem:[#allocation3 + $0x60] sm:$0xff]
    %v168 = vld [vmem:[#allocation3 + $0x68] sm:$0xff]
    %v169 = vld [vmem:[#allocation3 + $0x70] sm:$0xff]
    %v170 = vld [vmem:[#allocation3 + $0x78] sm:$0xff]
    %v171 = vld [vmem:[#allocation3 + $0x80] sm:$0xff]
    %v172 = vld [vmem:[#allocation3 + $0x88] sm:$0xff]
    %v173 = vld [vmem:[#allocation3 + $0x90] sm:$0xff]
    %v174 = vld [vmem:[#allocation3 + $0x98] sm:$0xff]
    %v175 = vld [vmem:[#allocation3 + $0xa0] sm:$0xff]
    %v176 = vld [vmem:[#allocation3 + $0xa8] sm:$0xff]
    %v177 = vld [vmem:[#allocation3 + $0xb0] sm:$0xff]
    %v178 = vld [vmem:[#allocation3 + $0xb8] sm:$0xff]
    %v179 = vld [vmem:[#allocation3 + $0xc0] sm:$0xff]
    %v180 = vld [vmem:[#allocation3 + $0xc8] sm:$0xff]
    %v181 = vld [vmem:[#allocation3 + $0xd0] sm:$0xff]
    %v182 = vld [vmem:[#allocation3 + $0xd8] sm:$0xff]
    %v183 = vld [vmem:[#allocation3 + $0xe0] sm:$0xff]
    %v184 = vld [vmem:[#allocation3 + $0xe8] sm:$0xff]
    %v185 = vld [vmem:[#allocation3 + $0xf0] sm:$0xff]
    %v186 = vld [vmem:[#allocation3 + $0xf8] sm:$0xff]
    %v187 = vld [vmem:[#allocation3 + $0x100] sm:$0xff]
    %v188 = vld [vmem:[#allocation3 + $0x108] sm:$0xff]
    %v189 = vld [vmem:[#allocation3 + $0x110] sm:$0xff]
    %v190 = vld [vmem:[#allocation3 + $0x118] sm:$0xff]
    %v191 = vld [vmem:[#allocation3 + $0x120] sm:$0xff]
    %v192 = vld [vmem:[#allocation3 + $0x128] sm:$0xff]
    %v193 = vld [vmem:[#allocation3 + $0x130] sm:$0xff]
    %v194 = vld [vmem:[#allocation3 + $0x138] sm:$0xff]
    %v195 = vld [vmem:[#allocation3 + $0x140] sm:$0xff]
    %v196 = vld [vmem:[#allocation3 + $0x148] sm:$0xff]
    %v197 = vld [vmem:[#allocation3 + $0x150] sm:$0xff]
    %v198 = vld [vmem:[#allocation3 + $0x158] sm:$0xff]
    %v199 = vld [vmem:[#allocation3 + $0x160] sm:$0xff]
    %v200 = vld [vmem:[#allocation3 + $0x168] sm:$0xff]
    %v201 = vld [vmem:[#allocation3 + $0x170] sm:$0xff]
    %v202 = vld [vmem:[#allocation3 + $0x178] sm:$0xff]
    %v203 = vld [vmem:[#allocation3 + $0x180] sm:$0xff]
    %v204 = vld [vmem:[#allocation3 + $0x188] sm:$0xff]
    %v205 = vld [vmem:[#allocation3 + $0x190] sm:$0xff]
    %v206 = vld [vmem:[#allocation3 + $0x198] sm:$0xff]
    %v207 = vld [vmem:[#allocation3 + $0x1a0] sm:$0xff]
    %v208 = vld [vmem:[#allocation3 + $0x1a8] sm:$0xff]
    %v209 = vld [vmem:[#allocation3 + $0x1b0] sm:$0xff]
    %v210 = vld [vmem:[#allocation3 + $0x1b8] sm:$0xff]
    %v211 = vld [vmem:[#allocation3 + $0x1c0] sm:$0xff]
    %v212 = vld [vmem:[#allocation3 + $0x1c8] sm:$0xff]
    %v213 = vld [vmem:[#allocation3 + $0x1d0] sm:$0xff]
    %v214 = vld [vmem:[#allocation3 + $0x1d8] sm:$0xff]
    %275 = vrot.lane.b32.xlu0 %v155, 127
    %v276 = vpop.permute.xlu0 %275
    %277 = vrot.lane.b32.xlu0 %v156, 127
    %v278 = vpop.permute.xlu0 %277
    %279 = vrot.lane.b32.xlu0 %v157, 127
    %v280 = vpop.permute.xlu0 %279
    %281 = vrot.lane.b32.xlu0 %v158, 127
    %v282 = vpop.permute.xlu0 %281
    %283 = vrot.lane.b32.xlu0 %v159, 127
    %v284 = vpop.permute.xlu0 %283
    %285 = vrot.lane.b32.xlu0 %v160, 127
    %v286 = vpop.permute.xlu0 %285
    %287 = vrot.lane.b32.xlu0 %v161, 127
    %v288 = vpop.permute.xlu0 %287
    %289 = vrot.lane.b32.xlu0 %v162, 127
    %v290 = vpop.permute.xlu0 %289
    %291 = vrot.lane.b32.xlu0 %v163, 127
    %v292 = vpop.permute.xlu0 %291
    %293 = vrot.lane.b32.xlu0 %v164, 127
    %v294 = vpop.permute.xlu0 %293
    %295 = vrot.lane.b32.xlu0 %v165, 127
    %v296 = vpop.permute.xlu0 %295
    %297 = vrot.lane.b32.xlu0 %v166, 127
    %v298 = vpop.permute.xlu0 %297
    %299 = vrot.lane.b32.xlu0 %v167, 127
    %v300 = vpop.permute.xlu0 %299
    %301 = vrot.lane.b32.xlu0 %v168, 127
    %v302 = vpop.permute.xlu0 %301
    %303 = vrot.lane.b32.xlu0 %v169, 127
    %v304 = vpop.permute.xlu0 %303
    %305 = vrot.lane.b32.xlu0 %v170, 127
    %v306 = vpop.permute.xlu0 %305
    %307 = vrot.lane.b32.xlu0 %v171, 127
    %v308 = vpop.permute.xlu0 %307
    %309 = vrot.lane.b32.xlu0 %v172, 127
    %v310 = vpop.permute.xlu0 %309
    %311 = vrot.lane.b32.xlu0 %v173, 127
    %v312 = vpop.permute.xlu0 %311
    %313 = vrot.lane.b32.xlu0 %v174, 127
    %v314 = vpop.permute.xlu0 %313
    %315 = vrot.lane.b32.xlu0 %v175, 127
    %v316 = vpop.permute.xlu0 %315
    %317 = vrot.lane.b32.xlu0 %v176, 127
    %v318 = vpop.permute.xlu0 %317
    %319 = vrot.lane.b32.xlu0 %v177, 127
    %v320 = vpop.permute.xlu0 %319
    %321 = vrot.lane.b32.xlu0 %v178, 127
    %v322 = vpop.permute.xlu0 %321
    %323 = vrot.lane.b32.xlu0 %v179, 127
    %v324 = vpop.permute.xlu0 %323
    %325 = vrot.lane.b32.xlu0 %v180, 127
    %v326 = vpop.permute.xlu0 %325
    %327 = vrot.lane.b32.xlu0 %v181, 127
    %v328 = vpop.permute.xlu0 %327
    %329 = vrot.lane.b32.xlu0 %v182, 127
    %v330 = vpop.permute.xlu0 %329
    %331 = vrot.lane.b32.xlu0 %v183, 127
    %v332 = vpop.permute.xlu0 %331
    %333 = vrot.lane.b32.xlu0 %v184, 127
    %v334 = vpop.permute.xlu0 %333
    %335 = vrot.lane.b32.xlu0 %v185, 127
    %v336 = vpop.permute.xlu0 %335
    %337 = vrot.lane.b32.xlu0 %v186, 127
    %v338 = vpop.permute.xlu0 %337
    %339 = vrot.lane.b32.xlu0 %v187, 127
    %v340 = vpop.permute.xlu0 %339
    %341 = vrot.lane.b32.xlu0 %v188, 127
    %v342 = vpop.permute.xlu0 %341
    %343 = vrot.lane.b32.xlu0 %v189, 127
    %v344 = vpop.permute.xlu0 %343
    %345 = vrot.lane.b32.xlu0 %v190, 127
    %v346 = vpop.permute.xlu0 %345
    %347 = vrot.lane.b32.xlu0 %v191, 127
    %v348 = vpop.permute.xlu0 %347
    %349 = vrot.lane.b32.xlu0 %v192, 127
    %v350 = vpop.permute.xlu0 %349
    %351 = vrot.lane.b32.xlu0 %v193, 127
    %v352 = vpop.permute.xlu0 %351
    %353 = vrot.lane.b32.xlu0 %v194, 127
    %v354 = vpop.permute.xlu0 %353
    %355 = vrot.lane.b32.xlu0 %v195, 127
    %v356 = vpop.permute.xlu0 %355
    %357 = vrot.lane.b32.xlu0 %v196, 127
    %v358 = vpop.permute.xlu0 %357
    %359 = vrot.lane.b32.xlu0 %v197, 127
    %v360 = vpop.permute.xlu0 %359
    %361 = vrot.lane.b32.xlu0 %v198, 127
    %v362 = vpop.permute.xlu0 %361
    %363 = vrot.lane.b32.xlu0 %v199, 127
    %v364 = vpop.permute.xlu0 %363
    %365 = vrot.lane.b32.xlu0 %v200, 127
    %v366 = vpop.permute.xlu0 %365
    %367 = vrot.lane.b32.xlu0 %v201, 127
    %v368 = vpop.permute.xlu0 %367
    %369 = vrot.lane.b32.xlu0 %v202, 127
    %v370 = vpop.permute.xlu0 %369
    %371 = vrot.lane.b32.xlu0 %v203, 127
    %v372 = vpop.permute.xlu0 %371
    %373 = vrot.lane.b32.xlu0 %v204, 127
    %v374 = vpop.permute.xlu0 %373
    %375 = vrot.lane.b32.xlu0 %v205, 127
    %v376 = vpop.permute.xlu0 %375
    %377 = vrot.lane.b32.xlu0 %v206, 127
    %v378 = vpop.permute.xlu0 %377
    %379 = vrot.lane.b32.xlu0 %v207, 127
    %v380 = vpop.permute.xlu0 %379
    %381 = vrot.lane.b32.xlu0 %v208, 127
    %v382 = vpop.permute.xlu0 %381
    %383 = vrot.lane.b32.xlu0 %v209, 127
    %v384 = vpop.permute.xlu0 %383
    %385 = vrot.lane.b32.xlu0 %v210, 127
    %v386 = vpop.permute.xlu0 %385
    %387 = vrot.lane.b32.xlu0 %v211, 127
    %v388 = vpop.permute.xlu0 %387
    %389 = vrot.lane.b32.xlu0 %v212, 127
    %v390 = vpop.permute.xlu0 %389
    %391 = vrot.lane.b32.xlu0 %v213, 127
    %v392 = vpop.permute.xlu0 %391
    %393 = vrot.lane.b32.xlu0 %v214, 127
    %v394 = vpop.permute.xlu0 %393
    %vm395 = vcmask 1039360
    %v396 = vsel %vm395, %v276, %v278
    %v397 = vsel %vm395, %v278, %v280
    %v398 = vsel %vm395, %v280, %v282
    %v399 = vsel %vm395, %v282, %v284
    %v400 = vsel %vm395, %v284, %v286
    %v401 = vsel %vm395, %v286, %v288
    %v402 = vsel %vm395, %v288, %v290
    %v403 = vsel %vm395, %v290, %v292
    %v404 = vsel %vm395, %v292, %v294
    %v405 = vsel %vm395, %v296, %v298
    %v406 = vsel %vm395, %v298, %v300
    %v407 = vsel %vm395, %v300, %v302
    %v408 = vsel %vm395, %v302, %v304
    %v409 = vsel %vm395, %v304, %v306
    %v410 = vsel %vm395, %v306, %v308
    %v411 = vsel %vm395, %v308, %v310
    %v412 = vsel %vm395, %v310, %v312
    %v413 = vsel %vm395, %v312, %v314
    %v414 = vsel %vm395, %v316, %v318
    %v415 = vsel %vm395, %v318, %v320
    %v416 = vsel %vm395, %v320, %v322
    %v417 = vsel %vm395, %v322, %v324
    %v418 = vsel %vm395, %v324, %v326
    %v419 = vsel %vm395, %v326, %v328
    %v420 = vsel %vm395, %v328, %v330
    %v421 = vsel %vm395, %v330, %v332
    %v422 = vsel %vm395, %v332, %v334
    %v423 = vsel %vm395, %v336, %v338
    %v424 = vsel %vm395, %v338, %v340
    %v425 = vsel %vm395, %v340, %v342
    %v426 = vsel %vm395, %v342, %v344
    %v427 = vsel %vm395, %v344, %v346
    %v428 = vsel %vm395, %v346, %v348
    %v429 = vsel %vm395, %v348, %v350
    %v430 = vsel %vm395, %v350, %v352
    %v431 = vsel %vm395, %v352, %v354
    %v432 = vsel %vm395, %v356, %v358
    %v433 = vsel %vm395, %v358, %v360
    %v434 = vsel %vm395, %v360, %v362
    %v435 = vsel %vm395, %v362, %v364
    %v436 = vsel %vm395, %v364, %v366
    %v437 = vsel %vm395, %v366, %v368
    %v438 = vsel %vm395, %v368, %v370
    %v439 = vsel %vm395, %v370, %v372
    %v440 = vsel %vm395, %v372, %v374
    %v441 = vsel %vm395, %v376, %v378
    %v442 = vsel %vm395, %v378, %v380
    %v443 = vsel %vm395, %v380, %v382
    %v444 = vsel %vm395, %v382, %v384
    %v445 = vsel %vm395, %v384, %v386
    %v446 = vsel %vm395, %v386, %v388
    %v447 = vsel %vm395, %v388, %v390
    %v448 = vsel %vm395, %v390, %v392
    %v449 = vsel %vm395, %v392, %v394
    %504 = vst [vmem:[#allocation2 + $0x1b0] sm:$0xff] %v396
    %505 = vst [vmem:[#allocation2 + $0x1b8] sm:$0xff] %v397
    %506 = vst [vmem:[#allocation2 + $0x1c0] sm:$0xff] %v398
    %507 = vst [vmem:[#allocation2 + $0x1c8] sm:$0xff] %v399
    %508 = vst [vmem:[#allocation2 + $0x1d0] sm:$0xff] %v400
    %509 = vst [vmem:[#allocation2 + $0x1d8] sm:$0xff] %v401
    %510 = vst [vmem:[#allocation2 + $0x1e0] sm:$0xff] %v402
    %511 = vst [vmem:[#allocation2 + $0x1e8] sm:$0xff] %v403
    %512 = vst [vmem:[#allocation2 + $0x1f0] sm:$0xff] %v404
    %513 = vst [vmem:[#allocation2 + $0x1f8] sm:$0xff] %v405
    %514 = vst [vmem:[#allocation2 + $0x200] sm:$0xff] %v406
    %515 = vst [vmem:[#allocation2 + $0x208] sm:$0xff] %v407
    %516 = vst [vmem:[#allocation2 + $0x210] sm:$0xff] %v408
    %517 = vst [vmem:[#allocation2 + $0x218] sm:$0xff] %v409
    %518 = vst [vmem:[#allocation2 + $0x220] sm:$0xff] %v410
    %519 = vst [vmem:[#allocation2 + $0x228] sm:$0xff] %v411
    %520 = vst [vmem:[#allocation2 + $0x230] sm:$0xff] %v412
    %521 = vst [vmem:[#allocation2 + $0x238] sm:$0xff] %v413
    %522 = vst [vmem:[#allocation2 + $0x240] sm:$0xff] %v414
    %523 = vst [vmem:[#allocation2 + $0x248] sm:$0xff] %v415
    %524 = vst [vmem:[#allocation2 + $0x250] sm:$0xff] %v416
    %525 = vst [vmem:[#allocation2 + $0x258] sm:$0xff] %v417
    %526 = vst [vmem:[#allocation2 + $0x260] sm:$0xff] %v418
    %527 = vst [vmem:[#allocation2 + $0x268] sm:$0xff] %v419
    %528 = vst [vmem:[#allocation2 + $0x270] sm:$0xff] %v420
    %529 = vst [vmem:[#allocation2 + $0x278] sm:$0xff] %v421
    %530 = vst [vmem:[#allocation2 + $0x280] sm:$0xff] %v422
    %531 = vst [vmem:[#allocation2 + $0x288] sm:$0xff] %v423
    %532 = vst [vmem:[#allocation2 + $0x290] sm:$0xff] %v424
    %533 = vst [vmem:[#allocation2 + $0x298] sm:$0xff] %v425
    %534 = vst [vmem:[#allocation2 + $0x2a0] sm:$0xff] %v426
    %535 = vst [vmem:[#allocation2 + $0x2a8] sm:$0xff] %v427
    %536 = vst [vmem:[#allocation2 + $0x2b0] sm:$0xff] %v428
    %537 = vst [vmem:[#allocation2 + $0x2b8] sm:$0xff] %v429
    %538 = vst [vmem:[#allocation2 + $0x2c0] sm:$0xff] %v430
    %539 = vst [vmem:[#allocation2 + $0x2c8] sm:$0xff] %v431
    %540 = vst [vmem:[#allocation2 + $0x2d0] sm:$0xff] %v432
    %541 = vst [vmem:[#allocation2 + $0x2d8] sm:$0xff] %v433
    %542 = vst [vmem:[#allocation2 + $0x2e0] sm:$0xff] %v434
    %543 = vst [vmem:[#allocation2 + $0x2e8] sm:$0xff] %v435
    %544 = vst [vmem:[#allocation2 + $0x2f0] sm:$0xff] %v436
    %545 = vst [vmem:[#allocation2 + $0x2f8] sm:$0xff] %v437
    %546 = vst [vmem:[#allocation2 + $0x300] sm:$0xff] %v438
    %547 = vst [vmem:[#allocation2 + $0x308] sm:$0xff] %v439
    %548 = vst [vmem:[#allocation2 + $0x310] sm:$0xff] %v440
    %549 = vst [vmem:[#allocation2 + $0x318] sm:$0xff] %v441
    %550 = vst [vmem:[#allocation2 + $0x320] sm:$0xff] %v442
    %551 = vst [vmem:[#allocation2 + $0x328] sm:$0xff] %v443
    %552 = vst [vmem:[#allocation2 + $0x330] sm:$0xff] %v444
    %553 = vst [vmem:[#allocation2 + $0x338] sm:$0xff] %v445
    %554 = vst [vmem:[#allocation2 + $0x340] sm:$0xff] %v446
    %555 = vst [vmem:[#allocation2 + $0x348] sm:$0xff] %v447
    %556 = vst [vmem:[#allocation2 + $0x350] sm:$0xff] %v448
    %557 = vst [vmem:[#allocation2 + $0x358] sm:$0xff] %v449
    %v558 = vld [vmem:[#allocation3] sm:$0xff]
    %v559 = vld [vmem:[#allocation3 + $0x8] sm:$0xff]
    %v560 = vld [vmem:[#allocation3 + $0x10] sm:$0xff]
    %v561 = vld [vmem:[#allocation3 + $0x18] sm:$0xff]
    %v562 = vld [vmem:[#allocation3 + $0x20] sm:$0xff]
    %v563 = vld [vmem:[#allocation3 + $0x28] sm:$0xff]
    %v564 = vld [vmem:[#allocation3 + $0x30] sm:$0xff]
    %v565 = vld [vmem:[#allocation3 + $0x38] sm:$0xff]
    %v566 = vld [vmem:[#allocation3 + $0x40] sm:$0xff]
    %v567 = vld [vmem:[#allocation3 + $0x48] sm:$0xff]
    %v568 = vld [vmem:[#allocation3 + $0x50] sm:$0xff]
    %v569 = vld [vmem:[#allocation3 + $0x58] sm:$0xff]
    %v570 = vld [vmem:[#allocation3 + $0x60] sm:$0xff]
    %v571 = vld [vmem:[#allocation3 + $0x68] sm:$0xff]
    %v572 = vld [vmem:[#allocation3 + $0x70] sm:$0xff]
    %v573 = vld [vmem:[#allocation3 + $0x78] sm:$0xff]
    %v574 = vld [vmem:[#allocation3 + $0x80] sm:$0xff]
    %v575 = vld [vmem:[#allocation3 + $0x88] sm:$0xff]
    %v576 = vld [vmem:[#allocation3 + $0x90] sm:$0xff]
    %v577 = vld [vmem:[#allocation3 + $0x98] sm:$0xff]
    %v578 = vld [vmem:[#allocation3 + $0xa0] sm:$0xff]
    %v579 = vld [vmem:[#allocation3 + $0xa8] sm:$0xff]
    %v580 = vld [vmem:[#allocation3 + $0xb0] sm:$0xff]
    %v581 = vld [vmem:[#allocation3 + $0xb8] sm:$0xff]
    %v582 = vld [vmem:[#allocation3 + $0xc0] sm:$0xff]
    %v583 = vld [vmem:[#allocation3 + $0xc8] sm:$0xff]
    %v584 = vld [vmem:[#allocation3 + $0xd0] sm:$0xff]
    %v585 = vld [vmem:[#allocation3 + $0xd8] sm:$0xff]
    %v586 = vld [vmem:[#allocation3 + $0xe0] sm:$0xff]
    %v587 = vld [vmem:[#allocation3 + $0xe8] sm:$0xff]
    %v588 = vld [vmem:[#allocation3 + $0xf0] sm:$0xff]
    %v589 = vld [vmem:[#allocation3 + $0xf8] sm:$0xff]
    %v590 = vld [vmem:[#allocation3 + $0x100] sm:$0xff]
    %v591 = vld [vmem:[#allocation3 + $0x108] sm:$0xff]
    %v592 = vld [vmem:[#allocation3 + $0x110] sm:$0xff]
    %v593 = vld [vmem:[#allocation3 + $0x118] sm:$0xff]
    %v594 = vld [vmem:[#allocation3 + $0x120] sm:$0xff]
    %v595 = vld [vmem:[#allocation3 + $0x128] sm:$0xff]
    %v596 = vld [vmem:[#allocation3 + $0x130] sm:$0xff]
    %v597 = vld [vmem:[#allocation3 + $0x138] sm:$0xff]
    %v598 = vld [vmem:[#allocation3 + $0x140] sm:$0xff]
    %v599 = vld [vmem:[#allocation3 + $0x148] sm:$0xff]
    %v600 = vld [vmem:[#allocation3 + $0x150] sm:$0xff]
    %v601 = vld [vmem:[#allocation3 + $0x158] sm:$0xff]
    %v602 = vld [vmem:[#allocation3 + $0x160] sm:$0xff]
    %v603 = vld [vmem:[#allocation3 + $0x168] sm:$0xff]
    %v604 = vld [vmem:[#allocation3 + $0x170] sm:$0xff]
    %v605 = vld [vmem:[#allocation3 + $0x178] sm:$0xff]
    %v606 = vld [vmem:[#allocation3 + $0x180] sm:$0xff]
    %v607 = vld [vmem:[#allocation3 + $0x188] sm:$0xff]
    %v608 = vld [vmem:[#allocation3 + $0x190] sm:$0xff]
    %v609 = vld [vmem:[#allocation3 + $0x198] sm:$0xff]
    %v610 = vld [vmem:[#allocation3 + $0x1a0] sm:$0xff]
    %v611 = vld [vmem:[#allocation3 + $0x1a8] sm:$0xff]
    %v612 = vld [vmem:[#allocation3 + $0x1b0] sm:$0xff]
    %v613 = vld [vmem:[#allocation3 + $0x1b8] sm:$0xff]
    %v614 = vld [vmem:[#allocation3 + $0x1c0] sm:$0xff]
    %v615 = vld [vmem:[#allocation3 + $0x1c8] sm:$0xff]
    %v616 = vld [vmem:[#allocation3 + $0x1d0] sm:$0xff]
    %v617 = vld [vmem:[#allocation3 + $0x1d8] sm:$0xff]
    %678 = vrot.lane.b32.xlu0 %v558, 94
    %v679 = vpop.permute.xlu0 %678
    %680 = vrot.lane.b32.xlu0 %v559, 94
    %v681 = vpop.permute.xlu0 %680
    %682 = vrot.lane.b32.xlu0 %v560, 94
    %v683 = vpop.permute.xlu0 %682
    %684 = vrot.lane.b32.xlu0 %v561, 94
    %v685 = vpop.permute.xlu0 %684
    %686 = vrot.lane.b32.xlu0 %v562, 94
    %v687 = vpop.permute.xlu0 %686
    %688 = vrot.lane.b32.xlu0 %v563, 94
    %v689 = vpop.permute.xlu0 %688
    %690 = vrot.lane.b32.xlu0 %v564, 94
    %v691 = vpop.permute.xlu0 %690
    %692 = vrot.lane.b32.xlu0 %v565, 94
    %v693 = vpop.permute.xlu0 %692
    %694 = vrot.lane.b32.xlu0 %v566, 94
    %v695 = vpop.permute.xlu0 %694
    %696 = vrot.lane.b32.xlu0 %v567, 94
    %v697 = vpop.permute.xlu0 %696
    %698 = vrot.lane.b32.xlu0 %v568, 94
    %v699 = vpop.permute.xlu0 %698
    %700 = vrot.lane.b32.xlu0 %v569, 94
    %v701 = vpop.permute.xlu0 %700
    %702 = vrot.lane.b32.xlu0 %v570, 94
    %v703 = vpop.permute.xlu0 %702
    %704 = vrot.lane.b32.xlu0 %v571, 94
    %v705 = vpop.permute.xlu0 %704
    %706 = vrot.lane.b32.xlu0 %v572, 94
    %v707 = vpop.permute.xlu0 %706
    %708 = vrot.lane.b32.xlu0 %v573, 94
    %v709 = vpop.permute.xlu0 %708
    %710 = vrot.lane.b32.xlu0 %v574, 94
    %v711 = vpop.permute.xlu0 %710
    %712 = vrot.lane.b32.xlu0 %v575, 94
    %v713 = vpop.permute.xlu0 %712
    %714 = vrot.lane.b32.xlu0 %v576, 94
    %v715 = vpop.permute.xlu0 %714
    %716 = vrot.lane.b32.xlu0 %v577, 94
    %v717 = vpop.permute.xlu0 %716
    %718 = vrot.lane.b32.xlu0 %v578, 94
    %v719 = vpop.permute.xlu0 %718
    %720 = vrot.lane.b32.xlu0 %v579, 94
    %v721 = vpop.permute.xlu0 %720
    %722 = vrot.lane.b32.xlu0 %v580, 94
    %v723 = vpop.permute.xlu0 %722
    %724 = vrot.lane.b32.xlu0 %v581, 94
    %v725 = vpop.permute.xlu0 %724
    %726 = vrot.lane.b32.xlu0 %v582, 94
    %v727 = vpop.permute.xlu0 %726
    %728 = vrot.lane.b32.xlu0 %v583, 94
    %v729 = vpop.permute.xlu0 %728
    %730 = vrot.lane.b32.xlu0 %v584, 94
    %v731 = vpop.permute.xlu0 %730
    %732 = vrot.lane.b32.xlu0 %v585, 94
    %v733 = vpop.permute.xlu0 %732
    %734 = vrot.lane.b32.xlu0 %v586, 94
    %v735 = vpop.permute.xlu0 %734
    %736 = vrot.lane.b32.xlu0 %v587, 94
    %v737 = vpop.permute.xlu0 %736
    %738 = vrot.lane.b32.xlu0 %v588, 94
    %v739 = vpop.permute.xlu0 %738
    %740 = vrot.lane.b32.xlu0 %v589, 94
    %v741 = vpop.permute.xlu0 %740
    %742 = vrot.lane.b32.xlu0 %v590, 94
    %v743 = vpop.permute.xlu0 %742
    %744 = vrot.lane.b32.xlu0 %v591, 94
    %v745 = vpop.permute.xlu0 %744
    %746 = vrot.lane.b32.xlu0 %v592, 94
    %v747 = vpop.permute.xlu0 %746
    %748 = vrot.lane.b32.xlu0 %v593, 94
    %v749 = vpop.permute.xlu0 %748
    %750 = vrot.lane.b32.xlu0 %v594, 94
    %v751 = vpop.permute.xlu0 %750
    %752 = vrot.lane.b32.xlu0 %v595, 94
    %v753 = vpop.permute.xlu0 %752
    %754 = vrot.lane.b32.xlu0 %v596, 94
    %v755 = vpop.permute.xlu0 %754
    %756 = vrot.lane.b32.xlu0 %v597, 94
    %v757 = vpop.permute.xlu0 %756
    %758 = vrot.lane.b32.xlu0 %v598, 94
    %v759 = vpop.permute.xlu0 %758
    %760 = vrot.lane.b32.xlu0 %v599, 94
    %v761 = vpop.permute.xlu0 %760
    %762 = vrot.lane.b32.xlu0 %v600, 94
    %v763 = vpop.permute.xlu0 %762
    %764 = vrot.lane.b32.xlu0 %v601, 94
    %v765 = vpop.permute.xlu0 %764
    %766 = vrot.lane.b32.xlu0 %v602, 94
    %v767 = vpop.permute.xlu0 %766
    %768 = vrot.lane.b32.xlu0 %v603, 94
    %v769 = vpop.permute.xlu0 %768
    %770 = vrot.lane.b32.xlu0 %v604, 94
    %v771 = vpop.permute.xlu0 %770
    %772 = vrot.lane.b32.xlu0 %v605, 94
    %v773 = vpop.permute.xlu0 %772
    %774 = vrot.lane.b32.xlu0 %v606, 94
    %v775 = vpop.permute.xlu0 %774
    %776 = vrot.lane.b32.xlu0 %v607, 94
    %v777 = vpop.permute.xlu0 %776
    %778 = vrot.lane.b32.xlu0 %v608, 94
    %v779 = vpop.permute.xlu0 %778
    %780 = vrot.lane.b32.xlu0 %v609, 94
    %v781 = vpop.permute.xlu0 %780
    %782 = vrot.lane.b32.xlu0 %v610, 94
    %v783 = vpop.permute.xlu0 %782
    %784 = vrot.lane.b32.xlu0 %v611, 94
    %v785 = vpop.permute.xlu0 %784
    %786 = vrot.lane.b32.xlu0 %v612, 94
    %v787 = vpop.permute.xlu0 %786
    %788 = vrot.lane.b32.xlu0 %v613, 94
    %v789 = vpop.permute.xlu0 %788
    %790 = vrot.lane.b32.xlu0 %v614, 94
    %v791 = vpop.permute.xlu0 %790
    %792 = vrot.lane.b32.xlu0 %v615, 94
    %v793 = vpop.permute.xlu0 %792
    %794 = vrot.lane.b32.xlu0 %v616, 94
    %v795 = vpop.permute.xlu0 %794
    %796 = vrot.lane.b32.xlu0 %v617, 94
    %v797 = vpop.permute.xlu0 %796
    %vm798 = vcmask 769024
    %v799 = vsel %vm798, %v679, %v681
    %v800 = vsel %vm798, %v681, %v683
    %v801 = vsel %vm798, %v683, %v685
    %v802 = vsel %vm798, %v685, %v687
    %v803 = vsel %vm798, %v687, %v689
    %v804 = vsel %vm798, %v689, %v691
    %v805 = vsel %vm798, %v691, %v693
    %v806 = vsel %vm798, %v693, %v695
    %v807 = vsel %vm798, %v695, %v697
    %v808 = vsel %vm798, %v699, %v701
    %v809 = vsel %vm798, %v701, %v703
    %v810 = vsel %vm798, %v703, %v705
    %v811 = vsel %vm798, %v705, %v707
    %v812 = vsel %vm798, %v707, %v709
    %v813 = vsel %vm798, %v709, %v711
    %v814 = vsel %vm798, %v711, %v713
    %v815 = vsel %vm798, %v713, %v715
    %v816 = vsel %vm798, %v715, %v717
    %v817 = vsel %vm798, %v719, %v721
    %v818 = vsel %vm798, %v721, %v723
    %v819 = vsel %vm798, %v723, %v725
    %v820 = vsel %vm798, %v725, %v727
    %v821 = vsel %vm798, %v727, %v729
    %v822 = vsel %vm798, %v729, %v731
    %v823 = vsel %vm798, %v731, %v733
    %v824 = vsel %vm798, %v733, %v735
    %v825 = vsel %vm798, %v735, %v737
    %v826 = vsel %vm798, %v739, %v741
    %v827 = vsel %vm798, %v741, %v743
    %v828 = vsel %vm798, %v743, %v745
    %v829 = vsel %vm798, %v745, %v747
    %v830 = vsel %vm798, %v747, %v749
    %v831 = vsel %vm798, %v749, %v751
    %v832 = vsel %vm798, %v751, %v753
    %v833 = vsel %vm798, %v753, %v755
    %v834 = vsel %vm798, %v755, %v757
    %v835 = vsel %vm798, %v759, %v761
    %v836 = vsel %vm798, %v761, %v763
    %v837 = vsel %vm798, %v763, %v765
    %v838 = vsel %vm798, %v765, %v767
    %v839 = vsel %vm798, %v767, %v769
    %v840 = vsel %vm798, %v769, %v771
    %v841 = vsel %vm798, %v771, %v773
    %v842 = vsel %vm798, %v773, %v775
    %v843 = vsel %vm798, %v775, %v777
    %v844 = vsel %vm798, %v779, %v781
    %v845 = vsel %vm798, %v781, %v783
    %v846 = vsel %vm798, %v783, %v785
    %v847 = vsel %vm798, %v785, %v787
    %v848 = vsel %vm798, %v787, %v789
    %v849 = vsel %vm798, %v789, %v791
    %v850 = vsel %vm798, %v791, %v793
    %v851 = vsel %vm798, %v793, %v795
    %v852 = vsel %vm798, %v795, %v797
    %907 = vst [vmem:[#allocation2 + $0x360] sm:$0xff] %v799
    %908 = vst [vmem:[#allocation2 + $0x368] sm:$0xff] %v800
    %909 = vst [vmem:[#allocation2 + $0x370] sm:$0xff] %v801
    %910 = vst [vmem:[#allocation2 + $0x378] sm:$0xff] %v802
    %911 = vst [vmem:[#allocation2 + $0x380] sm:$0xff] %v803
    %912 = vst [vmem:[#allocation2 + $0x388] sm:$0xff] %v804
    %913 = vst [vmem:[#allocation2 + $0x390] sm:$0xff] %v805
    %914 = vst [vmem:[#allocation2 + $0x398] sm:$0xff] %v806
    %915 = vst [vmem:[#allocation2 + $0x3a0] sm:$0xff] %v807
    %916 = vst [vmem:[#allocation2 + $0x3a8] sm:$0xff] %v808
    %917 = vst [vmem:[#allocation2 + $0x3b0] sm:$0xff] %v809
    %918 = vst [vmem:[#allocation2 + $0x3b8] sm:$0xff] %v810
    %919 = vst [vmem:[#allocation2 + $0x3c0] sm:$0xff] %v811
    %920 = vst [vmem:[#allocation2 + $0x3c8] sm:$0xff] %v812
    %921 = vst [vmem:[#allocation2 + $0x3d0] sm:$0xff] %v813
    %922 = vst [vmem:[#allocation2 + $0x3d8] sm:$0xff] %v814
    %923 = vst [vmem:[#allocation2 + $0x3e0] sm:$0xff] %v815
    %924 = vst [vmem:[#allocation2 + $0x3e8] sm:$0xff] %v816
    %925 = vst [vmem:[#allocation2 + $0x3f0] sm:$0xff] %v817
    %926 = vst [vmem:[#allocation2 + $0x3f8] sm:$0xff] %v818
    %927 = vst [vmem:[#allocation2 + $0x400] sm:$0xff] %v819
    %928 = vst [vmem:[#allocation2 + $0x408] sm:$0xff] %v820
    %929 = vst [vmem:[#allocation2 + $0x410] sm:$0xff] %v821
    %930 = vst [vmem:[#allocation2 + $0x418] sm:$0xff] %v822
    %931 = vst [vmem:[#allocation2 + $0x420] sm:$0xff] %v823
    %932 = vst [vmem:[#allocation2 + $0x428] sm:$0xff] %v824
    %933 = vst [vmem:[#allocation2 + $0x430] sm:$0xff] %v825
    %934 = vst [vmem:[#allocation2 + $0x438] sm:$0xff] %v826
    %935 = vst [vmem:[#allocation2 + $0x440] sm:$0xff] %v827
    %936 = vst [vmem:[#allocation2 + $0x448] sm:$0xff] %v828
    %937 = vst [vmem:[#allocation2 + $0x450] sm:$0xff] %v829
    %938 = vst [vmem:[#allocation2 + $0x458] sm:$0xff] %v830
    %939 = vst [vmem:[#allocation2 + $0x460] sm:$0xff] %v831
    %940 = vst [vmem:[#allocation2 + $0x468] sm:$0xff] %v832
    %941 = vst [vmem:[#allocation2 + $0x470] sm:$0xff] %v833
    %942 = vst [vmem:[#allocation2 + $0x478] sm:$0xff] %v834
    %943 = vst [vmem:[#allocation2 + $0x480] sm:$0xff] %v835
    %944 = vst [vmem:[#allocation2 + $0x488] sm:$0xff] %v836
    %945 = vst [vmem:[#allocation2 + $0x490] sm:$0xff] %v837
    %946 = vst [vmem:[#allocation2 + $0x498] sm:$0xff] %v838
    %947 = vst [vmem:[#allocation2 + $0x4a0] sm:$0xff] %v839
    %948 = vst [vmem:[#allocation2 + $0x4a8] sm:$0xff] %v840
    %949 = vst [vmem:[#allocation2 + $0x4b0] sm:$0xff] %v841
    %950 = vst [vmem:[#allocation2 + $0x4b8] sm:$0xff] %v842
    %951 = vst [vmem:[#allocation2 + $0x4c0] sm:$0xff] %v843
    %952 = vst [vmem:[#allocation2 + $0x4c8] sm:$0xff] %v844
    %953 = vst [vmem:[#allocation2 + $0x4d0] sm:$0xff] %v845
    %954 = vst [vmem:[#allocation2 + $0x4d8] sm:$0xff] %v846
    %955 = vst [vmem:[#allocation2 + $0x4e0] sm:$0xff] %v847
    %956 = vst [vmem:[#allocation2 + $0x4e8] sm:$0xff] %v848
    %957 = vst [vmem:[#allocation2 + $0x4f0] sm:$0xff] %v849
    %958 = vst [vmem:[#allocation2 + $0x4f8] sm:$0xff] %v850
    %959 = vst [vmem:[#allocation2 + $0x500] sm:$0xff] %v851
    %960 = vst [vmem:[#allocation2 + $0x508] sm:$0xff] %v852
    %v961 = vld [vmem:[#allocation3] sm:$0xff]
    %v962 = vld [vmem:[#allocation3 + $0x8] sm:$0xff]
    %v963 = vld [vmem:[#allocation3 + $0x10] sm:$0xff]
    %v964 = vld [vmem:[#allocation3 + $0x18] sm:$0xff]
    %v965 = vld [vmem:[#allocation3 + $0x20] sm:$0xff]
    %v966 = vld [vmem:[#allocation3 + $0x28] sm:$0xff]
    %v967 = vld [vmem:[#allocation3 + $0x30] sm:$0xff]
    %v968 = vld [vmem:[#allocation3 + $0x38] sm:$0xff]
    %v969 = vld [vmem:[#allocation3 + $0x40] sm:$0xff]
    %v970 = vld [vmem:[#allocation3 + $0x48] sm:$0xff]
    %v971 = vld [vmem:[#allocation3 + $0x50] sm:$0xff]
    %v972 = vld [vmem:[#allocation3 + $0x58] sm:$0xff]
    %v973 = vld [vmem:[#allocation3 + $0x60] sm:$0xff]
    %v974 = vld [vmem:[#allocation3 + $0x68] sm:$0xff]
    %v975 = vld [vmem:[#allocation3 + $0x70] sm:$0xff]
    %v976 = vld [vmem:[#allocation3 + $0x78] sm:$0xff]
    %v977 = vld [vmem:[#allocation3 + $0x80] sm:$0xff]
    %v978 = vld [vmem:[#allocation3 + $0x88] sm:$0xff]
    %v979 = vld [vmem:[#allocation3 + $0x90] sm:$0xff]
    %v980 = vld [vmem:[#allocation3 + $0x98] sm:$0xff]
    %v981 = vld [vmem:[#allocation3 + $0xa0] sm:$0xff]
    %v982 = vld [vmem:[#allocation3 + $0xa8] sm:$0xff]
    %v983 = vld [vmem:[#allocation3 + $0xb0] sm:$0xff]
    %v984 = vld [vmem:[#allocation3 + $0xb8] sm:$0xff]
    %v985 = vld [vmem:[#allocation3 + $0xc0] sm:$0xff]
    %v986 = vld [vmem:[#allocation3 + $0xc8] sm:$0xff]
    %v987 = vld [vmem:[#allocation3 + $0xd0] sm:$0xff]
    %v988 = vld [vmem:[#allocation3 + $0xd8] sm:$0xff]
    %v989 = vld [vmem:[#allocation3 + $0xe0] sm:$0xff]
    %v990 = vld [vmem:[#allocation3 + $0xe8] sm:$0xff]
    %v991 = vld [vmem:[#allocation3 + $0xf0] sm:$0xff]
    %v992 = vld [vmem:[#allocation3 + $0xf8] sm:$0xff]
    %v993 = vld [vmem:[#allocation3 + $0x100] sm:$0xff]
    %v994 = vld [vmem:[#allocation3 + $0x108] sm:$0xff]
    %v995 = vld [vmem:[#allocation3 + $0x110] sm:$0xff]
    %v996 = vld [vmem:[#allocation3 + $0x118] sm:$0xff]
    %v997 = vld [vmem:[#allocation3 + $0x120] sm:$0xff]
    %v998 = vld [vmem:[#allocation3 + $0x128] sm:$0xff]
    %v999 = vld [vmem:[#allocation3 + $0x130] sm:$0xff]
    %v1000 = vld [vmem:[#allocation3 + $0x138] sm:$0xff]
    %v1001 = vld [vmem:[#allocation3 + $0x140] sm:$0xff]
    %v1002 = vld [vmem:[#allocation3 + $0x148] sm:$0xff]
    %v1003 = vld [vmem:[#allocation3 + $0x150] sm:$0xff]
    %v1004 = vld [vmem:[#allocation3 + $0x158] sm:$0xff]
    %v1005 = vld [vmem:[#allocation3 + $0x160] sm:$0xff]
    %v1006 = vld [vmem:[#allocation3 + $0x168] sm:$0xff]
    %v1007 = vld [vmem:[#allocation3 + $0x170] sm:$0xff]
    %v1008 = vld [vmem:[#allocation3 + $0x178] sm:$0xff]
    %v1009 = vld [vmem:[#allocation3 + $0x180] sm:$0xff]
    %v1010 = vld [vmem:[#allocation3 + $0x188] sm:$0xff]
    %v1011 = vld [vmem:[#allocation3 + $0x190] sm:$0xff]
    %v1012 = vld [vmem:[#allocation3 + $0x198] sm:$0xff]
    %v1013 = vld [vmem:[#allocation3 + $0x1a0] sm:$0xff]
    %v1014 = vld [vmem:[#allocation3 + $0x1a8] sm:$0xff]
    %v1015 = vld [vmem:[#allocation3 + $0x1b0] sm:$0xff]
    %v1016 = vld [vmem:[#allocation3 + $0x1b8] sm:$0xff]
    %v1017 = vld [vmem:[#allocation3 + $0x1c0] sm:$0xff]
    %v1018 = vld [vmem:[#allocation3 + $0x1c8] sm:$0xff]
    %v1019 = vld [vmem:[#allocation3 + $0x1d0] sm:$0xff]
    %v1020 = vld [vmem:[#allocation3 + $0x1d8] sm:$0xff]
    %1081 = vrot.lane.b32.xlu0 %v961, 93
    %v1082 = vpop.permute.xlu0 %1081
    %1083 = vrot.lane.b32.xlu0 %v962, 93
    %v1084 = vpop.permute.xlu0 %1083
    %1085 = vrot.lane.b32.xlu0 %v963, 93
    %v1086 = vpop.permute.xlu0 %1085
    %1087 = vrot.lane.b32.xlu0 %v964, 93
    %v1088 = vpop.permute.xlu0 %1087
    %1089 = vrot.lane.b32.xlu0 %v965, 93
    %v1090 = vpop.permute.xlu0 %1089
    %1091 = vrot.lane.b32.xlu0 %v966, 93
    %v1092 = vpop.permute.xlu0 %1091
    %1093 = vrot.lane.b32.xlu0 %v967, 93
    %v1094 = vpop.permute.xlu0 %1093
    %1095 = vrot.lane.b32.xlu0 %v968, 93
    %v1096 = vpop.permute.xlu0 %1095
    %1097 = vrot.lane.b32.xlu0 %v969, 93
    %v1098 = vpop.permute.xlu0 %1097
    %1099 = vrot.lane.b32.xlu0 %v970, 93
    %v1100 = vpop.permute.xlu0 %1099
    %1101 = vrot.lane.b32.xlu0 %v971, 93
    %v1102 = vpop.permute.xlu0 %1101
    %1103 = vrot.lane.b32.xlu0 %v972, 93
    %v1104 = vpop.permute.xlu0 %1103
    %1105 = vrot.lane.b32.xlu0 %v973, 93
    %v1106 = vpop.permute.xlu0 %1105
    %1107 = vrot.lane.b32.xlu0 %v974, 93
    %v1108 = vpop.permute.xlu0 %1107
    %1109 = vrot.lane.b32.xlu0 %v975, 93
    %v1110 = vpop.permute.xlu0 %1109
    %1111 = vrot.lane.b32.xlu0 %v976, 93
    %v1112 = vpop.permute.xlu0 %1111
    %1113 = vrot.lane.b32.xlu0 %v977, 93
    %v1114 = vpop.permute.xlu0 %1113
    %1115 = vrot.lane.b32.xlu0 %v978, 93
    %v1116 = vpop.permute.xlu0 %1115
    %1117 = vrot.lane.b32.xlu0 %v979, 93
    %v1118 = vpop.permute.xlu0 %1117
    %1119 = vrot.lane.b32.xlu0 %v980, 93
    %v1120 = vpop.permute.xlu0 %1119
    %1121 = vrot.lane.b32.xlu0 %v981, 93
    %v1122 = vpop.permute.xlu0 %1121
    %1123 = vrot.lane.b32.xlu0 %v982, 93
    %v1124 = vpop.permute.xlu0 %1123
    %1125 = vrot.lane.b32.xlu0 %v983, 93
    %v1126 = vpop.permute.xlu0 %1125
    %1127 = vrot.lane.b32.xlu0 %v984, 93
    %v1128 = vpop.permute.xlu0 %1127
    %1129 = vrot.lane.b32.xlu0 %v985, 93
    %v1130 = vpop.permute.xlu0 %1129
    %1131 = vrot.lane.b32.xlu0 %v986, 93
    %v1132 = vpop.permute.xlu0 %1131
    %1133 = vrot.lane.b32.xlu0 %v987, 93
    %v1134 = vpop.permute.xlu0 %1133
    %1135 = vrot.lane.b32.xlu0 %v988, 93
    %v1136 = vpop.permute.xlu0 %1135
    %1137 = vrot.lane.b32.xlu0 %v989, 93
    %v1138 = vpop.permute.xlu0 %1137
    %1139 = vrot.lane.b32.xlu0 %v990, 93
    %v1140 = vpop.permute.xlu0 %1139
    %1141 = vrot.lane.b32.xlu0 %v991, 93
    %v1142 = vpop.permute.xlu0 %1141
    %1143 = vrot.lane.b32.xlu0 %v992, 93
    %v1144 = vpop.permute.xlu0 %1143
    %1145 = vrot.lane.b32.xlu0 %v993, 93
    %v1146 = vpop.permute.xlu0 %1145
    %1147 = vrot.lane.b32.xlu0 %v994, 93
    %v1148 = vpop.permute.xlu0 %1147
    %1149 = vrot.lane.b32.xlu0 %v995, 93
    %v1150 = vpop.permute.xlu0 %1149
    %1151 = vrot.lane.b32.xlu0 %v996, 93
    %v1152 = vpop.permute.xlu0 %1151
    %1153 = vrot.lane.b32.xlu0 %v997, 93
    %v1154 = vpop.permute.xlu0 %1153
    %1155 = vrot.lane.b32.xlu0 %v998, 93
    %v1156 = vpop.permute.xlu0 %1155
    %1157 = vrot.lane.b32.xlu0 %v999, 93
    %v1158 = vpop.permute.xlu0 %1157
    %1159 = vrot.lane.b32.xlu0 %v1000, 93
    %v1160 = vpop.permute.xlu0 %1159
    %1161 = vrot.lane.b32.xlu0 %v1001, 93
    %v1162 = vpop.permute.xlu0 %1161
    %1163 = vrot.lane.b32.xlu0 %v1002, 93
    %v1164 = vpop.permute.xlu0 %1163
    %1165 = vrot.lane.b32.xlu0 %v1003, 93
    %v1166 = vpop.permute.xlu0 %1165
    %1167 = vrot.lane.b32.xlu0 %v1004, 93
    %v1168 = vpop.permute.xlu0 %1167
    %1169 = vrot.lane.b32.xlu0 %v1005, 93
    %v1170 = vpop.permute.xlu0 %1169
    %1171 = vrot.lane.b32.xlu0 %v1006, 93
    %v1172 = vpop.permute.xlu0 %1171
    %1173 = vrot.lane.b32.xlu0 %v1007, 93
    %v1174 = vpop.permute.xlu0 %1173
    %1175 = vrot.lane.b32.xlu0 %v1008, 93
    %v1176 = vpop.permute.xlu0 %1175
    %1177 = vrot.lane.b32.xlu0 %v1009, 93
    %v1178 = vpop.permute.xlu0 %1177
    %1179 = vrot.lane.b32.xlu0 %v1010, 93
    %v1180 = vpop.permute.xlu0 %1179
    %1181 = vrot.lane.b32.xlu0 %v1011, 93
    %v1182 = vpop.permute.xlu0 %1181
    %1183 = vrot.lane.b32.xlu0 %v1012, 93
    %v1184 = vpop.permute.xlu0 %1183
    %1185 = vrot.lane.b32.xlu0 %v1013, 93
    %v1186 = vpop.permute.xlu0 %1185
    %1187 = vrot.lane.b32.xlu0 %v1014, 93
    %v1188 = vpop.permute.xlu0 %1187
    %1189 = vrot.lane.b32.xlu0 %v1015, 93
    %v1190 = vpop.permute.xlu0 %1189
    %1191 = vrot.lane.b32.xlu0 %v1016, 93
    %v1192 = vpop.permute.xlu0 %1191
    %1193 = vrot.lane.b32.xlu0 %v1017, 93
    %v1194 = vpop.permute.xlu0 %1193
    %1195 = vrot.lane.b32.xlu0 %v1018, 93
    %v1196 = vpop.permute.xlu0 %1195
    %1197 = vrot.lane.b32.xlu0 %v1019, 93
    %v1198 = vpop.permute.xlu0 %1197
    %1199 = vrot.lane.b32.xlu0 %v1020, 93
    %v1200 = vpop.permute.xlu0 %1199
    %vm1201 = vcmask 760832
    %v1202 = vsel %vm1201, %v1082, %v1084
    %v1203 = vsel %vm1201, %v1084, %v1086
    %v1204 = vsel %vm1201, %v1086, %v1088
    %v1205 = vsel %vm1201, %v1088, %v1090
    %v1206 = vsel %vm1201, %v1090, %v1092
    %v1207 = vsel %vm1201, %v1092, %v1094
    %v1208 = vsel %vm1201, %v1094, %v1096
    %v1209 = vsel %vm1201, %v1096, %v1098
    %v1210 = vsel %vm1201, %v1098, %v1100
    %v1211 = vsel %vm1201, %v1102, %v1104
    %v1212 = vsel %vm1201, %v1104, %v1106
    %v1213 = vsel %vm1201, %v1106, %v1108
    %v1214 = vsel %vm1201, %v1108, %v1110
    %v1215 = vsel %vm1201, %v1110, %v1112
    %v1216 = vsel %vm1201, %v1112, %v1114
    %v1217 = vsel %vm1201, %v1114, %v1116
    %v1218 = vsel %vm1201, %v1116, %v1118
    %v1219 = vsel %vm1201, %v1118, %v1120
    %v1220 = vsel %vm1201, %v1122, %v1124
    %v1221 = vsel %vm1201, %v1124, %v1126
    %v1222 = vsel %vm1201, %v1126, %v1128
    %v1223 = vsel %vm1201, %v1128, %v1130
    %v1224 = vsel %vm1201, %v1130, %v1132
    %v1225 = vsel %vm1201, %v1132, %v1134
    %v1226 = vsel %vm1201, %v1134, %v1136
    %v1227 = vsel %vm1201, %v1136, %v1138
    %v1228 = vsel %vm1201, %v1138, %v1140
    %v1229 = vsel %vm1201, %v1142, %v1144
    %v1230 = vsel %vm1201, %v1144, %v1146
    %v1231 = vsel %vm1201, %v1146, %v1148
    %v1232 = vsel %vm1201, %v1148, %v1150
    %v1233 = vsel %vm1201, %v1150, %v1152
    %v1234 = vsel %vm1201, %v1152, %v1154
    %v1235 = vsel %vm1201, %v1154, %v1156
    %v1236 = vsel %vm1201, %v1156, %v1158
    %v1237 = vsel %vm1201, %v1158, %v1160
    %v1238 = vsel %vm1201, %v1162, %v1164
    %v1239 = vsel %vm1201, %v1164, %v1166
    %v1240 = vsel %vm1201, %v1166, %v1168
    %v1241 = vsel %vm1201, %v1168, %v1170
    %v1242 = vsel %vm1201, %v1170, %v1172
    %v1243 = vsel %vm1201, %v1172, %v1174
    %v1244 = vsel %vm1201, %v1174, %v1176
    %v1245 = vsel %vm1201, %v1176, %v1178
    %v1246 = vsel %vm1201, %v1178, %v1180
    %v1247 = vsel %vm1201, %v1182, %v1184
    %v1248 = vsel %vm1201, %v1184, %v1186
    %v1249 = vsel %vm1201, %v1186, %v1188
    %v1250 = vsel %vm1201, %v1188, %v1190
    %v1251 = vsel %vm1201, %v1190, %v1192
    %v1252 = vsel %vm1201, %v1192, %v1194
    %v1253 = vsel %vm1201, %v1194, %v1196
    %v1254 = vsel %vm1201, %v1196, %v1198
    %v1255 = vsel %vm1201, %v1198, %v1200
    %1310 = vst [vmem:[#allocation2 + $0x510] sm:$0xff] %v1202
    %1311 = vst [vmem:[#allocation2 + $0x518] sm:$0xff] %v1203
    %1312 = vst [vmem:[#allocation2 + $0x520] sm:$0xff] %v1204
    %1313 = vst [vmem:[#allocation2 + $0x528] sm:$0xff] %v1205
    %1314 = vst [vmem:[#allocation2 + $0x530] sm:$0xff] %v1206
    %1315 = vst [vmem:[#allocation2 + $0x538] sm:$0xff] %v1207
    %1316 = vst [vmem:[#allocation2 + $0x540] sm:$0xff] %v1208
    %1317 = vst [vmem:[#allocation2 + $0x548] sm:$0xff] %v1209
    %1318 = vst [vmem:[#allocation2 + $0x550] sm:$0xff] %v1210
    %1319 = vst [vmem:[#allocation2 + $0x558] sm:$0xff] %v1211
    %1320 = vst [vmem:[#allocation2 + $0x560] sm:$0xff] %v1212
    %1321 = vst [vmem:[#allocation2 + $0x568] sm:$0xff] %v1213
    %1322 = vst [vmem:[#allocation2 + $0x570] sm:$0xff] %v1214
    %1323 = vst [vmem:[#allocation2 + $0x578] sm:$0xff] %v1215
    %1324 = vst [vmem:[#allocation2 + $0x580] sm:$0xff] %v1216
    %1325 = vst [vmem:[#allocation2 + $0x588] sm:$0xff] %v1217
    %1326 = vst [vmem:[#allocation2 + $0x590] sm:$0xff] %v1218
    %1327 = vst [vmem:[#allocation2 + $0x598] sm:$0xff] %v1219
    %1328 = vst [vmem:[#allocation2 + $0x5a0] sm:$0xff] %v1220
    %1329 = vst [vmem:[#allocation2 + $0x5a8] sm:$0xff] %v1221
    %1330 = vst [vmem:[#allocation2 + $0x5b0] sm:$0xff] %v1222
    %1331 = vst [vmem:[#allocation2 + $0x5b8] sm:$0xff] %v1223
    %1332 = vst [vmem:[#allocation2 + $0x5c0] sm:$0xff] %v1224
    %1333 = vst [vmem:[#allocation2 + $0x5c8] sm:$0xff] %v1225
    %1334 = vst [vmem:[#allocation2 + $0x5d0] sm:$0xff] %v1226
    %1335 = vst [vmem:[#allocation2 + $0x5d8] sm:$0xff] %v1227
    %1336 = vst [vmem:[#allocation2 + $0x5e0] sm:$0xff] %v1228
    %1337 = vst [vmem:[#allocation2 + $0x5e8] sm:$0xff] %v1229
    %1338 = vst [vmem:[#allocation2 + $0x5f0] sm:$0xff] %v1230
    %1339 = vst [vmem:[#allocation2 + $0x5f8] sm:$0xff] %v1231
    %1340 = vst [vmem:[#allocation2 + $0x600] sm:$0xff] %v1232
    %1341 = vst [vmem:[#allocation2 + $0x608] sm:$0xff] %v1233
    %1342 = vst [vmem:[#allocation2 + $0x610] sm:$0xff] %v1234
    %1343 = vst [vmem:[#allocation2 + $0x618] sm:$0xff] %v1235
    %1344 = vst [vmem:[#allocation2 + $0x620] sm:$0xff] %v1236
    %1345 = vst [vmem:[#allocation2 + $0x628] sm:$0xff] %v1237
    %1346 = vst [vmem:[#allocation2 + $0x630] sm:$0xff] %v1238
    %1347 = vst [vmem:[#allocation2 + $0x638] sm:$0xff] %v1239
    %1348 = vst [vmem:[#allocation2 + $0x640] sm:$0xff] %v1240
    %1349 = vst [vmem:[#allocation2 + $0x648] sm:$0xff] %v1241
    %1350 = vst [vmem:[#allocation2 + $0x650] sm:$0xff] %v1242
    %1351 = vst [vmem:[#allocation2 + $0x658] sm:$0xff] %v1243
    %1352 = vst [vmem:[#allocation2 + $0x660] sm:$0xff] %v1244
    %1353 = vst [vmem:[#allocation2 + $0x668] sm:$0xff] %v1245
    %1354 = vst [vmem:[#allocation2 + $0x670] sm:$0xff] %v1246
    %1355 = vst [vmem:[#allocation2 + $0x678] sm:$0xff] %v1247
    %1356 = vst [vmem:[#allocation2 + $0x680] sm:$0xff] %v1248
    %1357 = vst [vmem:[#allocation2 + $0x688] sm:$0xff] %v1249
    %1358 = vst [vmem:[#allocation2 + $0x690] sm:$0xff] %v1250
    %1359 = vst [vmem:[#allocation2 + $0x698] sm:$0xff] %v1251
    %1360 = vst [vmem:[#allocation2 + $0x6a0] sm:$0xff] %v1252
    %1361 = vst [vmem:[#allocation2 + $0x6a8] sm:$0xff] %v1253
    %1362 = vst [vmem:[#allocation2 + $0x6b0] sm:$0xff] %v1254
    %1363 = vst [vmem:[#allocation2 + $0x6b8] sm:$0xff] %v1255
    %v1364 = vld [vmem:[#allocation6] sm:$0xff]
    %v1365 = vld [vmem:[#allocation6 + $0x8] sm:$0xff]
    %v1366 = vld [vmem:[#allocation6 + $0x10] sm:$0xff]
    %v1367 = vld [vmem:[#allocation6 + $0x18] sm:$0xff]
    %v1368 = vld [vmem:[#allocation6 + $0x20] sm:$0xff]
    %v1369 = vld [vmem:[#allocation6 + $0x28] sm:$0xff]
    %v1370 = vld [vmem:[#allocation6 + $0x30] sm:$0xff]
    %v1371 = vld [vmem:[#allocation6 + $0x38] sm:$0xff]
    %v1372 = vld [vmem:[#allocation6 + $0x40] sm:$0xff]
    %v1373 = vld [vmem:[#allocation6 + $0x48] sm:$0xff]
    %v1374 = vld [vmem:[#allocation6 + $0x50] sm:$0xff]
    %v1375 = vld [vmem:[#allocation6 + $0x58] sm:$0xff]
    %v1376 = vld [vmem:[#allocation2] sm:$0xff]
    %v1377 = vld [vmem:[#allocation2 + $0x8] sm:$0xff]
    %v1378 = vld [vmem:[#allocation2 + $0x10] sm:$0xff]
    %v1379 = vld [vmem:[#allocation2 + $0x18] sm:$0xff]
    %v1380 = vld [vmem:[#allocation2 + $0x20] sm:$0xff]
    %v1381 = vld [vmem:[#allocation2 + $0x28] sm:$0xff]
    %v1382 = vld [vmem:[#allocation2 + $0x30] sm:$0xff]
    %v1383 = vld [vmem:[#allocation2 + $0x38] sm:$0xff]
    %v1384 = vld [vmem:[#allocation2 + $0x40] sm:$0xff]
    %v1385 = vld [vmem:[#allocation2 + $0x48] sm:$0xff]
    %v1386 = vld [vmem:[#allocation2 + $0x50] sm:$0xff]
    %v1387 = vld [vmem:[#allocation2 + $0x58] sm:$0xff]
    %v1388 = vld [vmem:[#allocation2 + $0x60] sm:$0xff]
    %v1389 = vld [vmem:[#allocation2 + $0x68] sm:$0xff]
    %v1390 = vld [vmem:[#allocation2 + $0x70] sm:$0xff]
    %v1391 = vld [vmem:[#allocation2 + $0x78] sm:$0xff]
    %v1392 = vld [vmem:[#allocation2 + $0x80] sm:$0xff]
    %v1393 = vld [vmem:[#allocation2 + $0x88] sm:$0xff]
    %v1394 = vld [vmem:[#allocation2 + $0x90] sm:$0xff]
    %v1395 = vld [vmem:[#allocation2 + $0x98] sm:$0xff]
    %v1396 = vld [vmem:[#allocation2 + $0xa0] sm:$0xff]
    %v1397 = vld [vmem:[#allocation2 + $0xa8] sm:$0xff]
    %v1398 = vld [vmem:[#allocation2 + $0xb0] sm:$0xff]
    %v1399 = vld [vmem:[#allocation2 + $0xb8] sm:$0xff]
    %v1400 = vld [vmem:[#allocation2 + $0xc0] sm:$0xff]
    %v1401 = vld [vmem:[#allocation2 + $0xc8] sm:$0xff]
    %v1402 = vld [vmem:[#allocation2 + $0xd0] sm:$0xff]
    %v1403 = vld [vmem:[#allocation2 + $0xd8] sm:$0xff]
    %v1404 = vld [vmem:[#allocation2 + $0xe0] sm:$0xff]
    %v1405 = vld [vmem:[#allocation2 + $0xe8] sm:$0xff]
    %v1406 = vld [vmem:[#allocation2 + $0xf0] sm:$0xff]
    %v1407 = vld [vmem:[#allocation2 + $0xf8] sm:$0xff]
    %v1408 = vld [vmem:[#allocation2 + $0x100] sm:$0xff]
    %v1409 = vld [vmem:[#allocation2 + $0x108] sm:$0xff]
    %v1410 = vld [vmem:[#allocation2 + $0x110] sm:$0xff]
    %v1411 = vld [vmem:[#allocation2 + $0x118] sm:$0xff]
    %v1412 = vld [vmem:[#allocation2 + $0x120] sm:$0xff]
    %v1413 = vld [vmem:[#allocation2 + $0x128] sm:$0xff]
    %v1414 = vld [vmem:[#allocation2 + $0x130] sm:$0xff]
    %v1415 = vld [vmem:[#allocation2 + $0x138] sm:$0xff]
    %v1416 = vld [vmem:[#allocation2 + $0x140] sm:$0xff]
    %v1417 = vld [vmem:[#allocation2 + $0x148] sm:$0xff]
    %v1418 = vld [vmem:[#allocation2 + $0x150] sm:$0xff]
    %v1419 = vld [vmem:[#allocation2 + $0x158] sm:$0xff]
    %v1420 = vld [vmem:[#allocation2 + $0x160] sm:$0xff]
    %v1421 = vld [vmem:[#allocation2 + $0x168] sm:$0xff]
    %v1422 = vld [vmem:[#allocation2 + $0x170] sm:$0xff]
    %v1423 = vld [vmem:[#allocation2 + $0x178] sm:$0xff]
    %v1424 = vld [vmem:[#allocation2 + $0x180] sm:$0xff]
    %v1425 = vld [vmem:[#allocation2 + $0x188] sm:$0xff]
    %v1426 = vld [vmem:[#allocation2 + $0x190] sm:$0xff]
    %v1427 = vld [vmem:[#allocation2 + $0x198] sm:$0xff]
    %v1428 = vld [vmem:[#allocation2 + $0x1a0] sm:$0xff]
    %v1429 = vld [vmem:[#allocation2 + $0x1a8] sm:$0xff]
    %v1430 = vld [vmem:[#allocation2 + $0x1b0] sm:$0xff]
    %v1431 = vld [vmem:[#allocation2 + $0x1b8] sm:$0xff]
    %v1432 = vld [vmem:[#allocation2 + $0x1c0] sm:$0xff]
    %v1433 = vld [vmem:[#allocation2 + $0x1c8] sm:$0xff]
    %v1434 = vld [vmem:[#allocation2 + $0x1d0] sm:$0xff]
    %v1435 = vld [vmem:[#allocation2 + $0x1d8] sm:$0xff]
    %v1436 = vld [vmem:[#allocation2 + $0x1e0] sm:$0xff]
    %v1437 = vld [vmem:[#allocation2 + $0x1e8] sm:$0xff]
    %v1438 = vld [vmem:[#allocation2 + $0x1f0] sm:$0xff]
    %v1439 = vld [vmem:[#allocation2 + $0x1f8] sm:$0xff]
    %v1440 = vld [vmem:[#allocation2 + $0x200] sm:$0xff]
    %v1441 = vld [vmem:[#allocation2 + $0x208] sm:$0xff]
    %v1442 = vld [vmem:[#allocation2 + $0x210] sm:$0xff]
    %v1443 = vld [vmem:[#allocation2 + $0x218] sm:$0xff]
    %v1444 = vld [vmem:[#allocation2 + $0x220] sm:$0xff]
    %v1445 = vld [vmem:[#allocation2 + $0x228] sm:$0xff]
    %v1446 = vld [vmem:[#allocation2 + $0x230] sm:$0xff]
    %v1447 = vld [vmem:[#allocation2 + $0x238] sm:$0xff]
    %v1448 = vld [vmem:[#allocation2 + $0x240] sm:$0xff]
    %v1449 = vld [vmem:[#allocation2 + $0x248] sm:$0xff]
    %v1450 = vld [vmem:[#allocation2 + $0x250] sm:$0xff]
    %v1451 = vld [vmem:[#allocation2 + $0x258] sm:$0xff]
    %v1452 = vld [vmem:[#allocation2 + $0x260] sm:$0xff]
    %v1453 = vld [vmem:[#allocation2 + $0x268] sm:$0xff]
    %v1454 = vld [vmem:[#allocation2 + $0x270] sm:$0xff]
    %v1455 = vld [vmem:[#allocation2 + $0x278] sm:$0xff]
    %v1456 = vld [vmem:[#allocation2 + $0x280] sm:$0xff]
    %v1457 = vld [vmem:[#allocation2 + $0x288] sm:$0xff]
    %v1458 = vld [vmem:[#allocation2 + $0x290] sm:$0xff]
    %v1459 = vld [vmem:[#allocation2 + $0x298] sm:$0xff]
    %v1460 = vld [vmem:[#allocation2 + $0x2a0] sm:$0xff]
    %v1461 = vld [vmem:[#allocation2 + $0x2a8] sm:$0xff]
    %v1462 = vld [vmem:[#allocation2 + $0x2b0] sm:$0xff]
    %v1463 = vld [vmem:[#allocation2 + $0x2b8] sm:$0xff]
    %v1464 = vld [vmem:[#allocation2 + $0x2c0] sm:$0xff]
    %v1465 = vld [vmem:[#allocation2 + $0x2c8] sm:$0xff]
    %v1466 = vld [vmem:[#allocation2 + $0x2d0] sm:$0xff]
    %v1467 = vld [vmem:[#allocation2 + $0x2d8] sm:$0xff]
    %v1468 = vld [vmem:[#allocation2 + $0x2e0] sm:$0xff]
    %v1469 = vld [vmem:[#allocation2 + $0x2e8] sm:$0xff]
    %v1470 = vld [vmem:[#allocation2 + $0x2f0] sm:$0xff]
    %v1471 = vld [vmem:[#allocation2 + $0x2f8] sm:$0xff]
    %v1472 = vld [vmem:[#allocation2 + $0x300] sm:$0xff]
    %v1473 = vld [vmem:[#allocation2 + $0x308] sm:$0xff]
    %v1474 = vld [vmem:[#allocation2 + $0x310] sm:$0xff]
    %v1475 = vld [vmem:[#allocation2 + $0x318] sm:$0xff]
    %v1476 = vld [vmem:[#allocation2 + $0x320] sm:$0xff]
    %v1477 = vld [vmem:[#allocation2 + $0x328] sm:$0xff]
    %v1478 = vld [vmem:[#allocation2 + $0x330] sm:$0xff]
    %v1479 = vld [vmem:[#allocation2 + $0x338] sm:$0xff]
    %v1480 = vld [vmem:[#allocation2 + $0x340] sm:$0xff]
    %v1481 = vld [vmem:[#allocation2 + $0x348] sm:$0xff]
    %v1482 = vld [vmem:[#allocation2 + $0x350] sm:$0xff]
    %v1483 = vld [vmem:[#allocation2 + $0x358] sm:$0xff]
    %v1484 = vld [vmem:[#allocation2 + $0x360] sm:$0xff]
    %v1485 = vld [vmem:[#allocation2 + $0x368] sm:$0xff]
    %v1486 = vld [vmem:[#allocation2 + $0x370] sm:$0xff]
    %v1487 = vld [vmem:[#allocation2 + $0x378] sm:$0xff]
    %v1488 = vld [vmem:[#allocation2 + $0x380] sm:$0xff]
    %v1489 = vld [vmem:[#allocation2 + $0x388] sm:$0xff]
    %v1490 = vld [vmem:[#allocation2 + $0x390] sm:$0xff]
    %v1491 = vld [vmem:[#allocation2 + $0x398] sm:$0xff]
    %v1492 = vld [vmem:[#allocation2 + $0x3a0] sm:$0xff]
    %v1493 = vld [vmem:[#allocation2 + $0x3a8] sm:$0xff]
    %v1494 = vld [vmem:[#allocation2 + $0x3b0] sm:$0xff]
    %v1495 = vld [vmem:[#allocation2 + $0x3b8] sm:$0xff]
    %v1496 = vld [vmem:[#allocation2 + $0x3c0] sm:$0xff]
    %v1497 = vld [vmem:[#allocation2 + $0x3c8] sm:$0xff]
    %v1498 = vld [vmem:[#allocation2 + $0x3d0] sm:$0xff]
    %v1499 = vld [vmem:[#allocation2 + $0x3d8] sm:$0xff]
    %v1500 = vld [vmem:[#allocation2 + $0x3e0] sm:$0xff]
    %v1501 = vld [vmem:[#allocation2 + $0x3e8] sm:$0xff]
    %v1502 = vld [vmem:[#allocation2 + $0x3f0] sm:$0xff]
    %v1503 = vld [vmem:[#allocation2 + $0x3f8] sm:$0xff]
    %v1504 = vld [vmem:[#allocation2 + $0x400] sm:$0xff]
    %v1505 = vld [vmem:[#allocation2 + $0x408] sm:$0xff]
    %v1506 = vld [vmem:[#allocation2 + $0x410] sm:$0xff]
    %v1507 = vld [vmem:[#allocation2 + $0x418] sm:$0xff]
    %v1508 = vld [vmem:[#allocation2 + $0x420] sm:$0xff]
    %v1509 = vld [vmem:[#allocation2 + $0x428] sm:$0xff]
    %v1510 = vld [vmem:[#allocation2 + $0x430] sm:$0xff]
    %v1511 = vld [vmem:[#allocation2 + $0x438] sm:$0xff]
    %v1512 = vld [vmem:[#allocation2 + $0x440] sm:$0xff]
    %v1513 = vld [vmem:[#allocation2 + $0x448] sm:$0xff]
    %v1514 = vld [vmem:[#allocation2 + $0x450] sm:$0xff]
    %v1515 = vld [vmem:[#allocation2 + $0x458] sm:$0xff]
    %v1516 = vld [vmem:[#allocation2 + $0x460] sm:$0xff]
    %v1517 = vld [vmem:[#allocation2 + $0x468] sm:$0xff]
    %v1518 = vld [vmem:[#allocation2 + $0x470] sm:$0xff]
    %v1519 = vld [vmem:[#allocation2 + $0x478] sm:$0xff]
    %v1520 = vld [vmem:[#allocation2 + $0x480] sm:$0xff]
    %v1521 = vld [vmem:[#allocation2 + $0x488] sm:$0xff]
    %v1522 = vld [vmem:[#allocation2 + $0x490] sm:$0xff]
    %v1523 = vld [vmem:[#allocation2 + $0x498] sm:$0xff]
    %v1524 = vld [vmem:[#allocation2 + $0x4a0] sm:$0xff]
    %v1525 = vld [vmem:[#allocation2 + $0x4a8] sm:$0xff]
    %v1526 = vld [vmem:[#allocation2 + $0x4b0] sm:$0xff]
    %v1527 = vld [vmem:[#allocation2 + $0x4b8] sm:$0xff]
    %v1528 = vld [vmem:[#allocation2 + $0x4c0] sm:$0xff]
    %v1529 = vld [vmem:[#allocation2 + $0x4c8] sm:$0xff]
    %v1530 = vld [vmem:[#allocation2 + $0x4d0] sm:$0xff]
    %v1531 = vld [vmem:[#allocation2 + $0x4d8] sm:$0xff]
    %v1532 = vld [vmem:[#allocation2 + $0x4e0] sm:$0xff]
    %v1533 = vld [vmem:[#allocation2 + $0x4e8] sm:$0xff]
    %v1534 = vld [vmem:[#allocation2 + $0x4f0] sm:$0xff]
    %v1535 = vld [vmem:[#allocation2 + $0x4f8] sm:$0xff]
    %v1536 = vld [vmem:[#allocation2 + $0x500] sm:$0xff]
    %v1537 = vld [vmem:[#allocation2 + $0x508] sm:$0xff]
    %v1538 = vld [vmem:[#allocation2 + $0x510] sm:$0xff]
    %v1539 = vld [vmem:[#allocation2 + $0x518] sm:$0xff]
    %v1540 = vld [vmem:[#allocation2 + $0x520] sm:$0xff]
    %v1541 = vld [vmem:[#allocation2 + $0x528] sm:$0xff]
    %v1542 = vld [vmem:[#allocation2 + $0x530] sm:$0xff]
    %v1543 = vld [vmem:[#allocation2 + $0x538] sm:$0xff]
    %v1544 = vld [vmem:[#allocation2 + $0x540] sm:$0xff]
    %v1545 = vld [vmem:[#allocation2 + $0x548] sm:$0xff]
    %v1546 = vld [vmem:[#allocation2 + $0x550] sm:$0xff]
    %v1547 = vld [vmem:[#allocation2 + $0x558] sm:$0xff]
    %v1548 = vld [vmem:[#allocation2 + $0x560] sm:$0xff]
    %v1549 = vld [vmem:[#allocation2 + $0x568] sm:$0xff]
    %v1550 = vld [vmem:[#allocation2 + $0x570] sm:$0xff]
    %v1551 = vld [vmem:[#allocation2 + $0x578] sm:$0xff]
    %v1552 = vld [vmem:[#allocation2 + $0x580] sm:$0xff]
    %v1553 = vld [vmem:[#allocation2 + $0x588] sm:$0xff]
    %v1554 = vld [vmem:[#allocation2 + $0x590] sm:$0xff]
    %v1555 = vld [vmem:[#allocation2 + $0x598] sm:$0xff]
    %v1556 = vld [vmem:[#allocation2 + $0x5a0] sm:$0xff]
    %v1557 = vld [vmem:[#allocation2 + $0x5a8] sm:$0xff]
    %v1558 = vld [vmem:[#allocation2 + $0x5b0] sm:$0xff]
    %v1559 = vld [vmem:[#allocation2 + $0x5b8] sm:$0xff]
    %v1560 = vld [vmem:[#allocation2 + $0x5c0] sm:$0xff]
    %v1561 = vld [vmem:[#allocation2 + $0x5c8] sm:$0xff]
    %v1562 = vld [vmem:[#allocation2 + $0x5d0] sm:$0xff]
    %v1563 = vld [vmem:[#allocation2 + $0x5d8] sm:$0xff]
    %v1564 = vld [vmem:[#allocation2 + $0x5e0] sm:$0xff]
    %v1565 = vld [vmem:[#allocation2 + $0x5e8] sm:$0xff]
    %v1566 = vld [vmem:[#allocation2 + $0x5f0] sm:$0xff]
    %v1567 = vld [vmem:[#allocation2 + $0x5f8] sm:$0xff]
    %v1568 = vld [vmem:[#allocation2 + $0x600] sm:$0xff]
    %v1569 = vld [vmem:[#allocation2 + $0x608] sm:$0xff]
    %v1570 = vld [vmem:[#allocation2 + $0x610] sm:$0xff]
    %v1571 = vld [vmem:[#allocation2 + $0x618] sm:$0xff]
    %v1572 = vld [vmem:[#allocation2 + $0x620] sm:$0xff]
    %v1573 = vld [vmem:[#allocation2 + $0x628] sm:$0xff]
    %v1574 = vld [vmem:[#allocation2 + $0x630] sm:$0xff]
    %v1575 = vld [vmem:[#allocation2 + $0x638] sm:$0xff]
    %v1576 = vld [vmem:[#allocation2 + $0x640] sm:$0xff]
    %v1577 = vld [vmem:[#allocation2 + $0x648] sm:$0xff]
    %v1578 = vld [vmem:[#allocation2 + $0x650] sm:$0xff]
    %v1579 = vld [vmem:[#allocation2 + $0x658] sm:$0xff]
    %v1580 = vld [vmem:[#allocation2 + $0x660] sm:$0xff]
    %v1581 = vld [vmem:[#allocation2 + $0x668] sm:$0xff]
    %v1582 = vld [vmem:[#allocation2 + $0x670] sm:$0xff]
    %v1583 = vld [vmem:[#allocation2 + $0x678] sm:$0xff]
    %v1584 = vld [vmem:[#allocation2 + $0x680] sm:$0xff]
    %v1585 = vld [vmem:[#allocation2 + $0x688] sm:$0xff]
    %v1586 = vld [vmem:[#allocation2 + $0x690] sm:$0xff]
    %v1587 = vld [vmem:[#allocation2 + $0x698] sm:$0xff]
    %v1588 = vld [vmem:[#allocation2 + $0x6a0] sm:$0xff]
    %v1589 = vld [vmem:[#allocation2 + $0x6a8] sm:$0xff]
    %v1590 = vld [vmem:[#allocation2 + $0x6b0] sm:$0xff]
    %v1591 = vld [vmem:[#allocation2 + $0x6b8] sm:$0xff]
    %v1592 = vld [vmem:[%s2] sm:$0xff]
    %v1593 = vld [vmem:[%s2 + $0x8] sm:$0xff]
    %v1594 = vld [vmem:[%s2 + $0x10] sm:$0xff]
    %v1595 = vld [vmem:[%s2 + $0x18] sm:$0xff]
    %v1596 = vld [vmem:[%s2 + $0x20] sm:$0xff]
    %v1597 = vld [vmem:[%s2 + $0x28] sm:$0xff]
    %1599 = vset.pattern.permute.xlu0 0
    %1600 = vperm.xlu0 %1599, %v1592
    %v1601 = vpop.permute.xlu0 %1600
    %1604 = vset.pattern.permute.xlu0 0
    %1605 = vperm.xlu0 %1604, %v1593
    %v1606 = vpop.permute.xlu0 %1605
    %1609 = vset.pattern.permute.xlu0 0
    %1610 = vperm.xlu0 %1609, %v1594
    %v1611 = vpop.permute.xlu0 %1610
    %1614 = vset.pattern.permute.xlu0 0
    %1615 = vperm.xlu0 %1614, %v1595
    %v1616 = vpop.permute.xlu0 %1615
    %1619 = vset.pattern.permute.xlu0 0
    %1620 = vperm.xlu0 %1619, %v1596
    %v1621 = vpop.permute.xlu0 %1620
    %1624 = vset.pattern.permute.xlu0 0
    %1625 = vperm.xlu0 %1624, %v1597
    %v1626 = vpop.permute.xlu0 %1625
    %vm1628 = vcmask 523264
    %v1630 = vsel %vm1628, %v1365, 0
    %v1633 = vsel %vm1628, %v1367, 0
    %v1636 = vsel %vm1628, %v1369, 0
    %v1639 = vsel %vm1628, %v1371, 0
    %v1642 = vsel %vm1628, %v1373, 0
    %v1645 = vsel %vm1628, %v1375, 0
    %1647 = vmatpush.msra.mxu0 %v1511
    %1648 = vmatpush.msra.mxu0 %v1502
    %1649 = vmatpush.msra.mxu0 %v1493
    %1650 = vmatpush.msra.mxu0 %v1484
    %1651 = vmatpush.msra.mxu0 %v1475
    %1652 = vmatpush.msra.mxu0 %v1466
    %1653 = vmatpush.msra.mxu0 %v1457
    %1654 = vmatpush.msra.mxu0 %v1448
    %1655 = vmatpush.msra.mxu0 %v1439
    %1656 = vmatpush.msra.mxu0 %v1430
    %1657 = vmatpush.msra.mxu0 %v1421
    %1658 = vmatpush.msra.mxu0 %v1412
    %1659 = vmatpush.msra.mxu0 %v1403
    %1660 = vmatpush.msra.mxu0 %v1394
    %1661 = vmatpush.msra.mxu0 %v1385
    %1662 = vmatpush.msra.mxu0 %v1376
    %1663 = vmatmul.f32.gmra.mxu0 %v1364
    %v1664 = vpop.f32.mrf.mxu0
    %v1665 = vadd.f32 %v1601, %v1664
    %1666 = vmatmul.f32.gmra.mxu0 %v1366
    %v1667 = vpop.f32.mrf.mxu0
    %v1668 = vadd.f32 %v1606, %v1667
    %1669 = vmatmul.f32.gmra.mxu0 %v1368
    %v1670 = vpop.f32.mrf.mxu0
    %v1671 = vadd.f32 %v1611, %v1670
    %1672 = vmatmul.f32.gmra.mxu0 %v1370
    %v1673 = vpop.f32.mrf.mxu0
    %v1674 = vadd.f32 %v1616, %v1673
    %1675 = vmatmul.f32.gmra.mxu0 %v1372
    %v1676 = vpop.f32.mrf.mxu0
    %v1677 = vadd.f32 %v1621, %v1676
    %1678 = vmatmul.f32.gmra.mxu0 %v1374
    %v1679 = vpop.f32.mrf.mxu0
    %v1680 = vadd.f32 %v1626, %v1679
    %1681 = vdwg.mxu0
    %1682 = vmatpush.msra.mxu0 0.0
    %1683 = vmatpush.msra.mxu0 0.0
    %1684 = vmatpush.msra.mxu0 0.0
    %1685 = vmatpush.msra.mxu0 0.0
    %1686 = vmatpush.msra.mxu0 0.0
    %1687 = vmatpush.msra.mxu0 0.0
    %1688 = vmatpush.msra.mxu0 0.0
    %1689 = vmatpush.msra.mxu0 0.0
    %1690 = vmatpush.msra.mxu0 %v1583
    %1691 = vmatpush.msra.mxu0 %v1574
    %1692 = vmatpush.msra.mxu0 %v1565
    %1693 = vmatpush.msra.mxu0 %v1556
    %1694 = vmatpush.msra.mxu0 %v1547
    %1695 = vmatpush.msra.mxu0 %v1538
    %1696 = vmatpush.msra.mxu0 %v1529
    %1697 = vmatpush.msra.mxu0 %v1520
    %1698 = vmatmul.f32.gmra.mxu0 %v1630
    %v1699 = vpop.f32.mrf.mxu0
    %v1700 = vadd.f32 %v1665, %v1699
    %1701 = vmatmul.f32.gmra.mxu0 %v1633
    %v1702 = vpop.f32.mrf.mxu0
    %v1703 = vadd.f32 %v1668, %v1702
    %1704 = vmatmul.f32.gmra.mxu0 %v1636
    %v1705 = vpop.f32.mrf.mxu0
    %v1706 = vadd.f32 %v1671, %v1705
    %1707 = vmatmul.f32.gmra.mxu0 %v1639
    %v1708 = vpop.f32.mrf.mxu0
    %v1709 = vadd.f32 %v1674, %v1708
    %1710 = vmatmul.f32.gmra.mxu0 %v1642
    %v1711 = vpop.f32.mrf.mxu0
    %v1712 = vadd.f32 %v1677, %v1711
    %1713 = vmatmul.f32.gmra.mxu0 %v1645
    %v1714 = vpop.f32.mrf.mxu0
    %v1715 = vadd.f32 %v1680, %v1714
    %1716 = vdwg.mxu0
    %1717 = vmatpush.msra.mxu0 %v1512
    %1718 = vmatpush.msra.mxu0 %v1503
    %1719 = vmatpush.msra.mxu0 %v1494
    %1720 = vmatpush.msra.mxu0 %v1485
    %1721 = vmatpush.msra.mxu0 %v1476
    %1722 = vmatpush.msra.mxu0 %v1467
    %1723 = vmatpush.msra.mxu0 %v1458
    %1724 = vmatpush.msra.mxu0 %v1449
    %1725 = vmatpush.msra.mxu0 %v1440
    %1726 = vmatpush.msra.mxu0 %v1431
    %1727 = vmatpush.msra.mxu0 %v1422
    %1728 = vmatpush.msra.mxu0 %v1413
    %1729 = vmatpush.msra.mxu0 %v1404
    %1730 = vmatpush.msra.mxu0 %v1395
    %1731 = vmatpush.msra.mxu0 %v1386
    %1732 = vmatpush.msra.mxu0 %v1377
    %1733 = vmatmul.f32.gmra.mxu0 %v1364
    %v1734 = vpop.f32.mrf.mxu0
    %v1735 = vadd.f32 %v1601, %v1734
    %1736 = vmatmul.f32.gmra.mxu0 %v1366
    %v1737 = vpop.f32.mrf.mxu0
    %v1738 = vadd.f32 %v1606, %v1737
    %1739 = vmatmul.f32.gmra.mxu0 %v1368
    %v1740 = vpop.f32.mrf.mxu0
    %v1741 = vadd.f32 %v1611, %v1740
    %1742 = vmatmul.f32.gmra.mxu0 %v1370
    %v1743 = vpop.f32.mrf.mxu0
    %v1744 = vadd.f32 %v1616, %v1743
    %1745 = vmatmul.f32.gmra.mxu0 %v1372
    %v1746 = vpop.f32.mrf.mxu0
    %v1747 = vadd.f32 %v1621, %v1746
    %1748 = vmatmul.f32.gmra.mxu0 %v1374
    %v1749 = vpop.f32.mrf.mxu0
    %v1750 = vadd.f32 %v1626, %v1749
    %1751 = vdwg.mxu0
    %1752 = vmatpush.msra.mxu0 0.0
    %1753 = vmatpush.msra.mxu0 0.0
    %1754 = vmatpush.msra.mxu0 0.0
    %1755 = vmatpush.msra.mxu0 0.0
    %1756 = vmatpush.msra.mxu0 0.0
    %1757 = vmatpush.msra.mxu0 0.0
    %1758 = vmatpush.msra.mxu0 0.0
    %1759 = vmatpush.msra.mxu0 0.0
    %1760 = vmatpush.msra.mxu0 %v1584
    %1761 = vmatpush.msra.mxu0 %v1575
    %1762 = vmatpush.msra.mxu0 %v1566
    %1763 = vmatpush.msra.mxu0 %v1557
    %1764 = vmatpush.msra.mxu0 %v1548
    %1765 = vmatpush.msra.mxu0 %v1539
    %1766 = vmatpush.msra.mxu0 %v1530
    %1767 = vmatpush.msra.mxu0 %v1521
    %1768 = vmatmul.f32.gmra.mxu0 %v1630
    %v1769 = vpop.f32.mrf.mxu0
    %v1770 = vadd.f32 %v1735, %v1769
    %1771 = vmatmul.f32.gmra.mxu0 %v1633
    %v1772 = vpop.f32.mrf.mxu0
    %v1773 = vadd.f32 %v1738, %v1772
    %1774 = vmatmul.f32.gmra.mxu0 %v1636
    %v1775 = vpop.f32.mrf.mxu0
    %v1776 = vadd.f32 %v1741, %v1775
    %1777 = vmatmul.f32.gmra.mxu0 %v1639
    %v1778 = vpop.f32.mrf.mxu0
    %v1779 = vadd.f32 %v1744, %v1778
    %1780 = vmatmul.f32.gmra.mxu0 %v1642
    %v1781 = vpop.f32.mrf.mxu0
    %v1782 = vadd.f32 %v1747, %v1781
    %1783 = vmatmul.f32.gmra.mxu0 %v1645
    %v1784 = vpop.f32.mrf.mxu0
    %v1785 = vadd.f32 %v1750, %v1784
    %1786 = vdwg.mxu0
    %1787 = vmatpush.msra.mxu0 %v1513
    %1788 = vmatpush.msra.mxu0 %v1504
    %1789 = vmatpush.msra.mxu0 %v1495
    %1790 = vmatpush.msra.mxu0 %v1486
    %1791 = vmatpush.msra.mxu0 %v1477
    %1792 = vmatpush.msra.mxu0 %v1468
    %1793 = vmatpush.msra.mxu0 %v1459
    %1794 = vmatpush.msra.mxu0 %v1450
    %1795 = vmatpush.msra.mxu0 %v1441
    %1796 = vmatpush.msra.mxu0 %v1432
    %1797 = vmatpush.msra.mxu0 %v1423
    %1798 = vmatpush.msra.mxu0 %v1414
    %1799 = vmatpush.msra.mxu0 %v1405
    %1800 = vmatpush.msra.mxu0 %v1396
    %1801 = vmatpush.msra.mxu0 %v1387
    %1802 = vmatpush.msra.mxu0 %v1378
    %1803 = vmatmul.f32.gmra.mxu0 %v1364
    %v1804 = vpop.f32.mrf.mxu0
    %v1805 = vadd.f32 %v1601, %v1804
    %1806 = vmatmul.f32.gmra.mxu0 %v1366
    %v1807 = vpop.f32.mrf.mxu0
    %v1808 = vadd.f32 %v1606, %v1807
    %1809 = vmatmul.f32.gmra.mxu0 %v1368
    %v1810 = vpop.f32.mrf.mxu0
    %v1811 = vadd.f32 %v1611, %v1810
    %1812 = vmatmul.f32.gmra.mxu0 %v1370
    %v1813 = vpop.f32.mrf.mxu0
    %v1814 = vadd.f32 %v1616, %v1813
    %1815 = vmatmul.f32.gmra.mxu0 %v1372
    %v1816 = vpop.f32.mrf.mxu0
    %v1817 = vadd.f32 %v1621, %v1816
    %1818 = vmatmul.f32.gmra.mxu0 %v1374
    %v1819 = vpop.f32.mrf.mxu0
    %v1820 = vadd.f32 %v1626, %v1819
    %1821 = vdwg.mxu0
    %1822 = vmatpush.msra.mxu0 0.0
    %1823 = vmatpush.msra.mxu0 0.0
    %1824 = vmatpush.msra.mxu0 0.0
    %1825 = vmatpush.msra.mxu0 0.0
    %1826 = vmatpush.msra.mxu0 0.0
    %1827 = vmatpush.msra.mxu0 0.0
    %1828 = vmatpush.msra.mxu0 0.0
    %1829 = vmatpush.msra.mxu0 0.0
    %1830 = vmatpush.msra.mxu0 %v1585
    %1831 = vmatpush.msra.mxu0 %v1576
    %1832 = vmatpush.msra.mxu0 %v1567
    %1833 = vmatpush.msra.mxu0 %v1558
    %1834 = vmatpush.msra.mxu0 %v1549
    %1835 = vmatpush.msra.mxu0 %v1540
    %1836 = vmatpush.msra.mxu0 %v1531
    %1837 = vmatpush.msra.mxu0 %v1522
    %1838 = vmatmul.f32.gmra.mxu0 %v1630
    %v1839 = vpop.f32.mrf.mxu0
    %v1840 = vadd.f32 %v1805, %v1839
    %1841 = vmatmul.f32.gmra.mxu0 %v1633
    %v1842 = vpop.f32.mrf.mxu0
    %v1843 = vadd.f32 %v1808, %v1842
    %1844 = vmatmul.f32.gmra.mxu0 %v1636
    %v1845 = vpop.f32.mrf.mxu0
    %v1846 = vadd.f32 %v1811, %v1845
    %1847 = vmatmul.f32.gmra.mxu0 %v1639
    %v1848 = vpop.f32.mrf.mxu0
    %v1849 = vadd.f32 %v1814, %v1848
    %1850 = vmatmul.f32.gmra.mxu0 %v1642
    %v1851 = vpop.f32.mrf.mxu0
    %v1852 = vadd.f32 %v1817, %v1851
    %1853 = vmatmul.f32.gmra.mxu0 %v1645
    %v1854 = vpop.f32.mrf.mxu0
    %v1855 = vadd.f32 %v1820, %v1854
    %1856 = vdwg.mxu0
    %1857 = vmatpush.msra.mxu0 %v1514
    %1858 = vmatpush.msra.mxu0 %v1505
    %1859 = vmatpush.msra.mxu0 %v1496
    %1860 = vmatpush.msra.mxu0 %v1487
    %1861 = vmatpush.msra.mxu0 %v1478
    %1862 = vmatpush.msra.mxu0 %v1469
    %1863 = vmatpush.msra.mxu0 %v1460
    %1864 = vmatpush.msra.mxu0 %v1451
    %1865 = vmatpush.msra.mxu0 %v1442
    %1866 = vmatpush.msra.mxu0 %v1433
    %1867 = vmatpush.msra.mxu0 %v1424
    %1868 = vmatpush.msra.mxu0 %v1415
    %1869 = vmatpush.msra.mxu0 %v1406
    %1870 = vmatpush.msra.mxu0 %v1397
    %1871 = vmatpush.msra.mxu0 %v1388
    %1872 = vmatpush.msra.mxu0 %v1379
    %1873 = vmatmul.f32.gmra.mxu0 %v1364
    %v1874 = vpop.f32.mrf.mxu0
    %v1875 = vadd.f32 %v1601, %v1874
    %1876 = vmatmul.f32.gmra.mxu0 %v1366
    %v1877 = vpop.f32.mrf.mxu0
    %v1878 = vadd.f32 %v1606, %v1877
    %1879 = vmatmul.f32.gmra.mxu0 %v1368
    %v1880 = vpop.f32.mrf.mxu0
    %v1881 = vadd.f32 %v1611, %v1880
    %1882 = vmatmul.f32.gmra.mxu0 %v1370
    %v1883 = vpop.f32.mrf.mxu0
    %v1884 = vadd.f32 %v1616, %v1883
    %1885 = vmatmul.f32.gmra.mxu0 %v1372
    %v1886 = vpop.f32.mrf.mxu0
    %v1887 = vadd.f32 %v1621, %v1886
    %1888 = vmatmul.f32.gmra.mxu0 %v1374
    %v1889 = vpop.f32.mrf.mxu0
    %v1890 = vadd.f32 %v1626, %v1889
    %1891 = vdwg.mxu0
    %1892 = vmatpush.msra.mxu0 0.0
    %1893 = vmatpush.msra.mxu0 0.0
    %1894 = vmatpush.msra.mxu0 0.0
    %1895 = vmatpush.msra.mxu0 0.0
    %1896 = vmatpush.msra.mxu0 0.0
    %1897 = vmatpush.msra.mxu0 0.0
    %1898 = vmatpush.msra.mxu0 0.0
    %1899 = vmatpush.msra.mxu0 0.0
    %1900 = vmatpush.msra.mxu0 %v1586
    %1901 = vmatpush.msra.mxu0 %v1577
    %1902 = vmatpush.msra.mxu0 %v1568
    %1903 = vmatpush.msra.mxu0 %v1559
    %1904 = vmatpush.msra.mxu0 %v1550
    %1905 = vmatpush.msra.mxu0 %v1541
    %1906 = vmatpush.msra.mxu0 %v1532
    %1907 = vmatpush.msra.mxu0 %v1523
    %1908 = vmatmul.f32.gmra.mxu0 %v1630
    %v1909 = vpop.f32.mrf.mxu0
    %v1910 = vadd.f32 %v1875, %v1909
    %1911 = vmatmul.f32.gmra.mxu0 %v1633
    %v1912 = vpop.f32.mrf.mxu0
    %v1913 = vadd.f32 %v1878, %v1912
    %1914 = vmatmul.f32.gmra.mxu0 %v1636
    %v1915 = vpop.f32.mrf.mxu0
    %v1916 = vadd.f32 %v1881, %v1915
    %1917 = vmatmul.f32.gmra.mxu0 %v1639
    %v1918 = vpop.f32.mrf.mxu0
    %v1919 = vadd.f32 %v1884, %v1918
    %1920 = vmatmul.f32.gmra.mxu0 %v1642
    %v1921 = vpop.f32.mrf.mxu0
    %v1922 = vadd.f32 %v1887, %v1921
    %1923 = vmatmul.f32.gmra.mxu0 %v1645
    %v1924 = vpop.f32.mrf.mxu0
    %v1925 = vadd.f32 %v1890, %v1924
    %1926 = vdwg.mxu0
    %1927 = vmatpush.msra.mxu0 %v1515
    %1928 = vmatpush.msra.mxu0 %v1506
    %1929 = vmatpush.msra.mxu0 %v1497
    %1930 = vmatpush.msra.mxu0 %v1488
    %1931 = vmatpush.msra.mxu0 %v1479
    %1932 = vmatpush.msra.mxu0 %v1470
    %1933 = vmatpush.msra.mxu0 %v1461
    %1934 = vmatpush.msra.mxu0 %v1452
    %1935 = vmatpush.msra.mxu0 %v1443
    %1936 = vmatpush.msra.mxu0 %v1434
    %1937 = vmatpush.msra.mxu0 %v1425
    %1938 = vmatpush.msra.mxu0 %v1416
    %1939 = vmatpush.msra.mxu0 %v1407
    %1940 = vmatpush.msra.mxu0 %v1398
    %1941 = vmatpush.msra.mxu0 %v1389
    %1942 = vmatpush.msra.mxu0 %v1380
    %1943 = vmatmul.f32.gmra.mxu0 %v1364
    %v1944 = vpop.f32.mrf.mxu0
    %v1945 = vadd.f32 %v1601, %v1944
    %1946 = vmatmul.f32.gmra.mxu0 %v1366
    %v1947 = vpop.f32.mrf.mxu0
    %v1948 = vadd.f32 %v1606, %v1947
    %1949 = vmatmul.f32.gmra.mxu0 %v1368
    %v1950 = vpop.f32.mrf.mxu0
    %v1951 = vadd.f32 %v1611, %v1950
    %1952 = vmatmul.f32.gmra.mxu0 %v1370
    %v1953 = vpop.f32.mrf.mxu0
    %v1954 = vadd.f32 %v1616, %v1953
    %1955 = vmatmul.f32.gmra.mxu0 %v1372
    %v1956 = vpop.f32.mrf.mxu0
    %v1957 = vadd.f32 %v1621, %v1956
    %1958 = vmatmul.f32.gmra.mxu0 %v1374
    %v1959 = vpop.f32.mrf.mxu0
    %v1960 = vadd.f32 %v1626, %v1959
    %1961 = vdwg.mxu0
    %1962 = vmatpush.msra.mxu0 0.0
    %1963 = vmatpush.msra.mxu0 0.0
    %1964 = vmatpush.msra.mxu0 0.0
    %1965 = vmatpush.msra.mxu0 0.0
    %1966 = vmatpush.msra.mxu0 0.0
    %1967 = vmatpush.msra.mxu0 0.0
    %1968 = vmatpush.msra.mxu0 0.0
    %1969 = vmatpush.msra.mxu0 0.0
    %1970 = vmatpush.msra.mxu0 %v1587
    %1971 = vmatpush.msra.mxu0 %v1578
    %1972 = vmatpush.msra.mxu0 %v1569
    %1973 = vmatpush.msra.mxu0 %v1560
    %1974 = vmatpush.msra.mxu0 %v1551
    %1975 = vmatpush.msra.mxu0 %v1542
    %1976 = vmatpush.msra.mxu0 %v1533
    %1977 = vmatpush.msra.mxu0 %v1524
    %1978 = vmatmul.f32.gmra.mxu0 %v1630
    %v1979 = vpop.f32.mrf.mxu0
    %v1980 = vadd.f32 %v1945, %v1979
    %1981 = vmatmul.f32.gmra.mxu0 %v1633
    %v1982 = vpop.f32.mrf.mxu0
    %v1983 = vadd.f32 %v1948, %v1982
    %1984 = vmatmul.f32.gmra.mxu0 %v1636
    %v1985 = vpop.f32.mrf.mxu0
    %v1986 = vadd.f32 %v1951, %v1985
    %1987 = vmatmul.f32.gmra.mxu0 %v1639
    %v1988 = vpop.f32.mrf.mxu0
    %v1989 = vadd.f32 %v1954, %v1988
    %1990 = vmatmul.f32.gmra.mxu0 %v1642
    %v1991 = vpop.f32.mrf.mxu0
    %v1992 = vadd.f32 %v1957, %v1991
    %1993 = vmatmul.f32.gmra.mxu0 %v1645
    %v1994 = vpop.f32.mrf.mxu0
    %v1995 = vadd.f32 %v1960, %v1994
    %1996 = vdwg.mxu0
    %1997 = vmatpush.msra.mxu0 %v1516
    %1998 = vmatpush.msra.mxu0 %v1507
    %1999 = vmatpush.msra.mxu0 %v1498
    %2000 = vmatpush.msra.mxu0 %v1489
    %2001 = vmatpush.msra.mxu0 %v1480
    %2002 = vmatpush.msra.mxu0 %v1471
    %2003 = vmatpush.msra.mxu0 %v1462
    %2004 = vmatpush.msra.mxu0 %v1453
    %2005 = vmatpush.msra.mxu0 %v1444
    %2006 = vmatpush.msra.mxu0 %v1435
    %2007 = vmatpush.msra.mxu0 %v1426
    %2008 = vmatpush.msra.mxu0 %v1417
    %2009 = vmatpush.msra.mxu0 %v1408
    %2010 = vmatpush.msra.mxu0 %v1399
    %2011 = vmatpush.msra.mxu0 %v1390
    %2012 = vmatpush.msra.mxu0 %v1381
    %2013 = vmatmul.f32.gmra.mxu0 %v1364
    %v2014 = vpop.f32.mrf.mxu0
    %v2015 = vadd.f32 %v1601, %v2014
    %2016 = vmatmul.f32.gmra.mxu0 %v1366
    %v2017 = vpop.f32.mrf.mxu0
    %v2018 = vadd.f32 %v1606, %v2017
    %2019 = vmatmul.f32.gmra.mxu0 %v1368
    %v2020 = vpop.f32.mrf.mxu0
    %v2021 = vadd.f32 %v1611, %v2020
    %2022 = vmatmul.f32.gmra.mxu0 %v1370
    %v2023 = vpop.f32.mrf.mxu0
    %v2024 = vadd.f32 %v1616, %v2023
    %2025 = vmatmul.f32.gmra.mxu0 %v1372
    %v2026 = vpop.f32.mrf.mxu0
    %v2027 = vadd.f32 %v1621, %v2026
    %2028 = vmatmul.f32.gmra.mxu0 %v1374
    %v2029 = vpop.f32.mrf.mxu0
    %v2030 = vadd.f32 %v1626, %v2029
    %2031 = vdwg.mxu0
    %2032 = vmatpush.msra.mxu0 0.0
    %2033 = vmatpush.msra.mxu0 0.0
    %2034 = vmatpush.msra.mxu0 0.0
    %2035 = vmatpush.msra.mxu0 0.0
    %2036 = vmatpush.msra.mxu0 0.0
    %2037 = vmatpush.msra.mxu0 0.0
    %2038 = vmatpush.msra.mxu0 0.0
    %2039 = vmatpush.msra.mxu0 0.0
    %2040 = vmatpush.msra.mxu0 %v1588
    %2041 = vmatpush.msra.mxu0 %v1579
    %2042 = vmatpush.msra.mxu0 %v1570
    %2043 = vmatpush.msra.mxu0 %v1561
    %2044 = vmatpush.msra.mxu0 %v1552
    %2045 = vmatpush.msra.mxu0 %v1543
    %2046 = vmatpush.msra.mxu0 %v1534
    %2047 = vmatpush.msra.mxu0 %v1525
    %2048 = vmatmul.f32.gmra.mxu0 %v1630
    %v2049 = vpop.f32.mrf.mxu0
    %v2050 = vadd.f32 %v2015, %v2049
    %2051 = vmatmul.f32.gmra.mxu0 %v1633
    %v2052 = vpop.f32.mrf.mxu0
    %v2053 = vadd.f32 %v2018, %v2052
    %2054 = vmatmul.f32.gmra.mxu0 %v1636
    %v2055 = vpop.f32.mrf.mxu0
    %v2056 = vadd.f32 %v2021, %v2055
    %2057 = vmatmul.f32.gmra.mxu0 %v1639
    %v2058 = vpop.f32.mrf.mxu0
    %v2059 = vadd.f32 %v2024, %v2058
    %2060 = vmatmul.f32.gmra.mxu0 %v1642
    %v2061 = vpop.f32.mrf.mxu0
    %v2062 = vadd.f32 %v2027, %v2061
    %2063 = vmatmul.f32.gmra.mxu0 %v1645
    %v2064 = vpop.f32.mrf.mxu0
    %v2065 = vadd.f32 %v2030, %v2064
    %2066 = vdwg.mxu0
    %2067 = vmatpush.msra.mxu0 %v1517
    %2068 = vmatpush.msra.mxu0 %v1508
    %2069 = vmatpush.msra.mxu0 %v1499
    %2070 = vmatpush.msra.mxu0 %v1490
    %2071 = vmatpush.msra.mxu0 %v1481
    %2072 = vmatpush.msra.mxu0 %v1472
    %2073 = vmatpush.msra.mxu0 %v1463
    %2074 = vmatpush.msra.mxu0 %v1454
    %2075 = vmatpush.msra.mxu0 %v1445
    %2076 = vmatpush.msra.mxu0 %v1436
    %2077 = vmatpush.msra.mxu0 %v1427
    %2078 = vmatpush.msra.mxu0 %v1418
    %2079 = vmatpush.msra.mxu0 %v1409
    %2080 = vmatpush.msra.mxu0 %v1400
    %2081 = vmatpush.msra.mxu0 %v1391
    %2082 = vmatpush.msra.mxu0 %v1382
    %2083 = vmatmul.f32.gmra.mxu0 %v1364
    %v2084 = vpop.f32.mrf.mxu0
    %v2085 = vadd.f32 %v1601, %v2084
    %2086 = vmatmul.f32.gmra.mxu0 %v1366
    %v2087 = vpop.f32.mrf.mxu0
    %v2088 = vadd.f32 %v1606, %v2087
    %2089 = vmatmul.f32.gmra.mxu0 %v1368
    %v2090 = vpop.f32.mrf.mxu0
    %v2091 = vadd.f32 %v1611, %v2090
    %2092 = vmatmul.f32.gmra.mxu0 %v1370
    %v2093 = vpop.f32.mrf.mxu0
    %v2094 = vadd.f32 %v1616, %v2093
    %2095 = vmatmul.f32.gmra.mxu0 %v1372
    %v2096 = vpop.f32.mrf.mxu0
    %v2097 = vadd.f32 %v1621, %v2096
    %2098 = vmatmul.f32.gmra.mxu0 %v1374
    %v2099 = vpop.f32.mrf.mxu0
    %v2100 = vadd.f32 %v1626, %v2099
    %2101 = vdwg.mxu0
    %2102 = vmatpush.msra.mxu0 0.0
    %2103 = vmatpush.msra.mxu0 0.0
    %2104 = vmatpush.msra.mxu0 0.0
    %2105 = vmatpush.msra.mxu0 0.0
    %2106 = vmatpush.msra.mxu0 0.0
    %2107 = vmatpush.msra.mxu0 0.0
    %2108 = vmatpush.msra.mxu0 0.0
    %2109 = vmatpush.msra.mxu0 0.0
    %2110 = vmatpush.msra.mxu0 %v1589
    %2111 = vmatpush.msra.mxu0 %v1580
    %2112 = vmatpush.msra.mxu0 %v1571
    %2113 = vmatpush.msra.mxu0 %v1562
    %2114 = vmatpush.msra.mxu0 %v1553
    %2115 = vmatpush.msra.mxu0 %v1544
    %2116 = vmatpush.msra.mxu0 %v1535
    %2117 = vmatpush.msra.mxu0 %v1526
    %2118 = vmatmul.f32.gmra.mxu0 %v1630
    %v2119 = vpop.f32.mrf.mxu0
    %v2120 = vadd.f32 %v2085, %v2119
    %2121 = vmatmul.f32.gmra.mxu0 %v1633
    %v2122 = vpop.f32.mrf.mxu0
    %v2123 = vadd.f32 %v2088, %v2122
    %2124 = vmatmul.f32.gmra.mxu0 %v1636
    %v2125 = vpop.f32.mrf.mxu0
    %v2126 = vadd.f32 %v2091, %v2125
    %2127 = vmatmul.f32.gmra.mxu0 %v1639
    %v2128 = vpop.f32.mrf.mxu0
    %v2129 = vadd.f32 %v2094, %v2128
    %2130 = vmatmul.f32.gmra.mxu0 %v1642
    %v2131 = vpop.f32.mrf.mxu0
    %v2132 = vadd.f32 %v2097, %v2131
    %2133 = vmatmul.f32.gmra.mxu0 %v1645
    %v2134 = vpop.f32.mrf.mxu0
    %v2135 = vadd.f32 %v2100, %v2134
    %2136 = vdwg.mxu0
    %2137 = vmatpush.msra.mxu0 %v1518
    %2138 = vmatpush.msra.mxu0 %v1509
    %2139 = vmatpush.msra.mxu0 %v1500
    %2140 = vmatpush.msra.mxu0 %v1491
    %2141 = vmatpush.msra.mxu0 %v1482
    %2142 = vmatpush.msra.mxu0 %v1473
    %2143 = vmatpush.msra.mxu0 %v1464
    %2144 = vmatpush.msra.mxu0 %v1455
    %2145 = vmatpush.msra.mxu0 %v1446
    %2146 = vmatpush.msra.mxu0 %v1437
    %2147 = vmatpush.msra.mxu0 %v1428
    %2148 = vmatpush.msra.mxu0 %v1419
    %2149 = vmatpush.msra.mxu0 %v1410
    %2150 = vmatpush.msra.mxu0 %v1401
    %2151 = vmatpush.msra.mxu0 %v1392
    %2152 = vmatpush.msra.mxu0 %v1383
    %2153 = vmatmul.f32.gmra.mxu0 %v1364
    %v2154 = vpop.f32.mrf.mxu0
    %v2155 = vadd.f32 %v1601, %v2154
    %2156 = vmatmul.f32.gmra.mxu0 %v1366
    %v2157 = vpop.f32.mrf.mxu0
    %v2158 = vadd.f32 %v1606, %v2157
    %2159 = vmatmul.f32.gmra.mxu0 %v1368
    %v2160 = vpop.f32.mrf.mxu0
    %v2161 = vadd.f32 %v1611, %v2160
    %2162 = vmatmul.f32.gmra.mxu0 %v1370
    %v2163 = vpop.f32.mrf.mxu0
    %v2164 = vadd.f32 %v1616, %v2163
    %2165 = vmatmul.f32.gmra.mxu0 %v1372
    %v2166 = vpop.f32.mrf.mxu0
    %v2167 = vadd.f32 %v1621, %v2166
    %2168 = vmatmul.f32.gmra.mxu0 %v1374
    %v2169 = vpop.f32.mrf.mxu0
    %v2170 = vadd.f32 %v1626, %v2169
    %2171 = vdwg.mxu0
    %2172 = vmatpush.msra.mxu0 0.0
    %2173 = vmatpush.msra.mxu0 0.0
    %2174 = vmatpush.msra.mxu0 0.0
    %2175 = vmatpush.msra.mxu0 0.0
    %2176 = vmatpush.msra.mxu0 0.0
    %2177 = vmatpush.msra.mxu0 0.0
    %2178 = vmatpush.msra.mxu0 0.0
    %2179 = vmatpush.msra.mxu0 0.0
    %2180 = vmatpush.msra.mxu0 %v1590
    %2181 = vmatpush.msra.mxu0 %v1581
    %2182 = vmatpush.msra.mxu0 %v1572
    %2183 = vmatpush.msra.mxu0 %v1563
    %2184 = vmatpush.msra.mxu0 %v1554
    %2185 = vmatpush.msra.mxu0 %v1545
    %2186 = vmatpush.msra.mxu0 %v1536
    %2187 = vmatpush.msra.mxu0 %v1527
    %2188 = vmatmul.f32.gmra.mxu0 %v1630
    %v2189 = vpop.f32.mrf.mxu0
    %v2190 = vadd.f32 %v2155, %v2189
    %2191 = vmatmul.f32.gmra.mxu0 %v1633
    %v2192 = vpop.f32.mrf.mxu0
    %v2193 = vadd.f32 %v2158, %v2192
    %2194 = vmatmul.f32.gmra.mxu0 %v1636
    %v2195 = vpop.f32.mrf.mxu0
    %v2196 = vadd.f32 %v2161, %v2195
    %2197 = vmatmul.f32.gmra.mxu0 %v1639
    %v2198 = vpop.f32.mrf.mxu0
    %v2199 = vadd.f32 %v2164, %v2198
    %2200 = vmatmul.f32.gmra.mxu0 %v1642
    %v2201 = vpop.f32.mrf.mxu0
    %v2202 = vadd.f32 %v2167, %v2201
    %2203 = vmatmul.f32.gmra.mxu0 %v1645
    %v2204 = vpop.f32.mrf.mxu0
    %v2205 = vadd.f32 %v2170, %v2204
    %2206 = vdwg.mxu0
    %2207 = vmatpush.msra.mxu0 %v1519
    %2208 = vmatpush.msra.mxu0 %v1510
    %2209 = vmatpush.msra.mxu0 %v1501
    %2210 = vmatpush.msra.mxu0 %v1492
    %2211 = vmatpush.msra.mxu0 %v1483
    %2212 = vmatpush.msra.mxu0 %v1474
    %2213 = vmatpush.msra.mxu0 %v1465
    %2214 = vmatpush.msra.mxu0 %v1456
    %2215 = vmatpush.msra.mxu0 %v1447
    %2216 = vmatpush.msra.mxu0 %v1438
    %2217 = vmatpush.msra.mxu0 %v1429
    %2218 = vmatpush.msra.mxu0 %v1420
    %2219 = vmatpush.msra.mxu0 %v1411
    %2220 = vmatpush.msra.mxu0 %v1402
    %2221 = vmatpush.msra.mxu0 %v1393
    %2222 = vmatpush.msra.mxu0 %v1384
    %2223 = vmatmul.f32.gmra.mxu0 %v1364
    %v2224 = vpop.f32.mrf.mxu0
    %v2225 = vadd.f32 %v1601, %v2224
    %2226 = vmatmul.f32.gmra.mxu0 %v1366
    %v2227 = vpop.f32.mrf.mxu0
    %v2228 = vadd.f32 %v1606, %v2227
    %2229 = vmatmul.f32.gmra.mxu0 %v1368
    %v2230 = vpop.f32.mrf.mxu0
    %v2231 = vadd.f32 %v1611, %v2230
    %2232 = vmatmul.f32.gmra.mxu0 %v1370
    %v2233 = vpop.f32.mrf.mxu0
    %v2234 = vadd.f32 %v1616, %v2233
    %2235 = vmatmul.f32.gmra.mxu0 %v1372
    %v2236 = vpop.f32.mrf.mxu0
    %v2237 = vadd.f32 %v1621, %v2236
    %2238 = vmatmul.f32.gmra.mxu0 %v1374
    %v2239 = vpop.f32.mrf.mxu0
    %v2240 = vadd.f32 %v1626, %v2239
    %2241 = vdwg.mxu0
    %2242 = vmatpush.msra.mxu0 0.0
    %2243 = vmatpush.msra.mxu0 0.0
    %2244 = vmatpush.msra.mxu0 0.0
    %2245 = vmatpush.msra.mxu0 0.0
    %2246 = vmatpush.msra.mxu0 0.0
    %2247 = vmatpush.msra.mxu0 0.0
    %2248 = vmatpush.msra.mxu0 0.0
    %2249 = vmatpush.msra.mxu0 0.0
    %2250 = vmatpush.msra.mxu0 %v1591
    %2251 = vmatpush.msra.mxu0 %v1582
    %2252 = vmatpush.msra.mxu0 %v1573
    %2253 = vmatpush.msra.mxu0 %v1564
    %2254 = vmatpush.msra.mxu0 %v1555
    %2255 = vmatpush.msra.mxu0 %v1546
    %2256 = vmatpush.msra.mxu0 %v1537
    %2257 = vmatpush.msra.mxu0 %v1528
    %2258 = vmatmul.f32.gmra.mxu0 %v1630
    %v2259 = vpop.f32.mrf.mxu0
    %v2260 = vadd.f32 %v2225, %v2259
    %2261 = vmatmul.f32.gmra.mxu0 %v1633
    %v2262 = vpop.f32.mrf.mxu0
    %v2263 = vadd.f32 %v2228, %v2262
    %2264 = vmatmul.f32.gmra.mxu0 %v1636
    %v2265 = vpop.f32.mrf.mxu0
    %v2266 = vadd.f32 %v2231, %v2265
    %2267 = vmatmul.f32.gmra.mxu0 %v1639
    %v2268 = vpop.f32.mrf.mxu0
    %v2269 = vadd.f32 %v2234, %v2268
    %2270 = vmatmul.f32.gmra.mxu0 %v1642
    %v2271 = vpop.f32.mrf.mxu0
    %v2272 = vadd.f32 %v2237, %v2271
    %2273 = vmatmul.f32.gmra.mxu0 %v1645
    %v2274 = vpop.f32.mrf.mxu0
    %v2275 = vadd.f32 %v2240, %v2274
    %2276 = vdwg.mxu0
    %v2277 = vmax.f32 %v1700, 0.0
    %v2278 = vmax.f32 %v1770, 0.0
    %v2279 = vmax.f32 %v1840, 0.0
    %v2280 = vmax.f32 %v1910, 0.0
    %v2281 = vmax.f32 %v1980, 0.0
    %v2282 = vmax.f32 %v2050, 0.0
    %v2283 = vmax.f32 %v2120, 0.0
    %v2284 = vmax.f32 %v2190, 0.0
    %v2285 = vmax.f32 %v2260, 0.0
    %v2286 = vmax.f32 %v1703, 0.0
    %v2287 = vmax.f32 %v1773, 0.0
    %v2288 = vmax.f32 %v1843, 0.0
    %v2289 = vmax.f32 %v1913, 0.0
    %v2290 = vmax.f32 %v1983, 0.0
    %v2291 = vmax.f32 %v2053, 0.0
    %v2292 = vmax.f32 %v2123, 0.0
    %v2293 = vmax.f32 %v2193, 0.0
    %v2294 = vmax.f32 %v2263, 0.0
    %v2295 = vmax.f32 %v1706, 0.0
    %v2296 = vmax.f32 %v1776, 0.0
    %v2297 = vmax.f32 %v1846, 0.0
    %v2298 = vmax.f32 %v1916, 0.0
    %v2299 = vmax.f32 %v1986, 0.0
    %v2300 = vmax.f32 %v2056, 0.0
    %v2301 = vmax.f32 %v2126, 0.0
    %v2302 = vmax.f32 %v2196, 0.0
    %v2303 = vmax.f32 %v2266, 0.0
    %v2304 = vmax.f32 %v1709, 0.0
    %v2305 = vmax.f32 %v1779, 0.0
    %v2306 = vmax.f32 %v1849, 0.0
    %v2307 = vmax.f32 %v1919, 0.0
    %v2308 = vmax.f32 %v1989, 0.0
    %v2309 = vmax.f32 %v2059, 0.0
    %v2310 = vmax.f32 %v2129, 0.0
    %v2311 = vmax.f32 %v2199, 0.0
    %v2312 = vmax.f32 %v2269, 0.0
    %v2313 = vmax.f32 %v1712, 0.0
    %v2314 = vmax.f32 %v1782, 0.0
    %v2315 = vmax.f32 %v1852, 0.0
    %v2316 = vmax.f32 %v1922, 0.0
    %v2317 = vmax.f32 %v1992, 0.0
    %v2318 = vmax.f32 %v2062, 0.0
    %v2319 = vmax.f32 %v2132, 0.0
    %v2320 = vmax.f32 %v2202, 0.0
    %v2321 = vmax.f32 %v2272, 0.0
    %v2322 = vmax.f32 %v1715, 0.0
    %v2323 = vmax.f32 %v1785, 0.0
    %v2324 = vmax.f32 %v1855, 0.0
    %v2325 = vmax.f32 %v1925, 0.0
    %v2326 = vmax.f32 %v1995, 0.0
    %v2327 = vmax.f32 %v2065, 0.0
    %v2328 = vmax.f32 %v2135, 0.0
    %v2329 = vmax.f32 %v2205, 0.0
    %v2330 = vmax.f32 %v2275, 0.0
    %v2331 = vmin.f32 %v2277, 6.0
    %v2332 = vmin.f32 %v2278, 6.0
    %v2333 = vmin.f32 %v2279, 6.0
    %v2334 = vmin.f32 %v2280, 6.0
    %v2335 = vmin.f32 %v2281, 6.0
    %v2336 = vmin.f32 %v2282, 6.0
    %v2337 = vmin.f32 %v2283, 6.0
    %v2338 = vmin.f32 %v2284, 6.0
    %v2339 = vmin.f32 %v2285, 6.0
    %v2340 = vmin.f32 %v2286, 6.0
    %v2341 = vmin.f32 %v2287, 6.0
    %v2342 = vmin.f32 %v2288, 6.0
    %v2343 = vmin.f32 %v2289, 6.0
    %v2344 = vmin.f32 %v2290, 6.0
    %v2345 = vmin.f32 %v2291, 6.0
    %v2346 = vmin.f32 %v2292, 6.0
    %v2347 = vmin.f32 %v2293, 6.0
    %v2348 = vmin.f32 %v2294, 6.0
    %v2349 = vmin.f32 %v2295, 6.0
    %v2350 = vmin.f32 %v2296, 6.0
    %v2351 = vmin.f32 %v2297, 6.0
    %v2352 = vmin.f32 %v2298, 6.0
    %v2353 = vmin.f32 %v2299, 6.0
    %v2354 = vmin.f32 %v2300, 6.0
    %v2355 = vmin.f32 %v2301, 6.0
    %v2356 = vmin.f32 %v2302, 6.0
    %v2357 = vmin.f32 %v2303, 6.0
    %v2358 = vmin.f32 %v2304, 6.0
    %v2359 = vmin.f32 %v2305, 6.0
    %v2360 = vmin.f32 %v2306, 6.0
    %v2361 = vmin.f32 %v2307, 6.0
    %v2362 = vmin.f32 %v2308, 6.0
    %v2363 = vmin.f32 %v2309, 6.0
    %v2364 = vmin.f32 %v2310, 6.0
    %v2365 = vmin.f32 %v2311, 6.0
    %v2366 = vmin.f32 %v2312, 6.0
    %v2367 = vmin.f32 %v2313, 6.0
    %v2368 = vmin.f32 %v2314, 6.0
    %v2369 = vmin.f32 %v2315, 6.0
    %v2370 = vmin.f32 %v2316, 6.0
    %v2371 = vmin.f32 %v2317, 6.0
    %v2372 = vmin.f32 %v2318, 6.0
    %v2373 = vmin.f32 %v2319, 6.0
    %v2374 = vmin.f32 %v2320, 6.0
    %v2375 = vmin.f32 %v2321, 6.0
    %v2376 = vmin.f32 %v2322, 6.0
    %v2377 = vmin.f32 %v2323, 6.0
    %v2378 = vmin.f32 %v2324, 6.0
    %v2379 = vmin.f32 %v2325, 6.0
    %v2380 = vmin.f32 %v2326, 6.0
    %v2381 = vmin.f32 %v2327, 6.0
    %v2382 = vmin.f32 %v2328, 6.0
    %v2383 = vmin.f32 %v2329, 6.0
    %v2384 = vmin.f32 %v2330, 6.0
    %2385 = vst [vmem:[#allocation8] sm:$0xff] %v2331
    %2386 = vst [vmem:[#allocation8 + $0x8] sm:$0xff] %v2332
    %2387 = vst [vmem:[#allocation8 + $0x10] sm:$0xff] %v2333
    %2388 = vst [vmem:[#allocation8 + $0x18] sm:$0xff] %v2334
    %2389 = vst [vmem:[#allocation8 + $0x20] sm:$0xff] %v2335
    %2390 = vst [vmem:[#allocation8 + $0x28] sm:$0xff] %v2336
    %2391 = vst [vmem:[#allocation8 + $0x30] sm:$0xff] %v2337
    %2392 = vst [vmem:[#allocation8 + $0x38] sm:$0xff] %v2338
    %2393 = vst [vmem:[#allocation8 + $0x40] sm:$0xff] %v2339
    %2394 = vst [vmem:[#allocation8 + $0x48] sm:$0xff] %v2340
    %2395 = vst [vmem:[#allocation8 + $0x50] sm:$0xff] %v2341
    %2396 = vst [vmem:[#allocation8 + $0x58] sm:$0xff] %v2342
    %2397 = vst [vmem:[#allocation8 + $0x60] sm:$0xff] %v2343
    %2398 = vst [vmem:[#allocation8 + $0x68] sm:$0xff] %v2344
    %2399 = vst [vmem:[#allocation8 + $0x70] sm:$0xff] %v2345
    %2400 = vst [vmem:[#allocation8 + $0x78] sm:$0xff] %v2346
    %2401 = vst [vmem:[#allocation8 + $0x80] sm:$0xff] %v2347
    %2402 = vst [vmem:[#allocation8 + $0x88] sm:$0xff] %v2348
    %2403 = vst [vmem:[#allocation8 + $0x90] sm:$0xff] %v2349
    %2404 = vst [vmem:[#allocation8 + $0x98] sm:$0xff] %v2350
    %2405 = vst [vmem:[#allocation8 + $0xa0] sm:$0xff] %v2351
    %2406 = vst [vmem:[#allocation8 + $0xa8] sm:$0xff] %v2352
    %2407 = vst [vmem:[#allocation8 + $0xb0] sm:$0xff] %v2353
    %2408 = vst [vmem:[#allocation8 + $0xb8] sm:$0xff] %v2354
    %2409 = vst [vmem:[#allocation8 + $0xc0] sm:$0xff] %v2355
    %2410 = vst [vmem:[#allocation8 + $0xc8] sm:$0xff] %v2356
    %2411 = vst [vmem:[#allocation8 + $0xd0] sm:$0xff] %v2357
    %2412 = vst [vmem:[#allocation8 + $0xd8] sm:$0xff] %v2358
    %2413 = vst [vmem:[#allocation8 + $0xe0] sm:$0xff] %v2359
    %2414 = vst [vmem:[#allocation8 + $0xe8] sm:$0xff] %v2360
    %2415 = vst [vmem:[#allocation8 + $0xf0] sm:$0xff] %v2361
    %2416 = vst [vmem:[#allocation8 + $0xf8] sm:$0xff] %v2362
    %2417 = vst [vmem:[#allocation8 + $0x100] sm:$0xff] %v2363
    %2418 = vst [vmem:[#allocation8 + $0x108] sm:$0xff] %v2364
    %2419 = vst [vmem:[#allocation8 + $0x110] sm:$0xff] %v2365
    %2420 = vst [vmem:[#allocation8 + $0x118] sm:$0xff] %v2366
    %2421 = vst [vmem:[#allocation8 + $0x120] sm:$0xff] %v2367
    %2422 = vst [vmem:[#allocation8 + $0x128] sm:$0xff] %v2368
    %2423 = vst [vmem:[#allocation8 + $0x130] sm:$0xff] %v2369
    %2424 = vst [vmem:[#allocation8 + $0x138] sm:$0xff] %v2370
    %2425 = vst [vmem:[#allocation8 + $0x140] sm:$0xff] %v2371
    %2426 = vst [vmem:[#allocation8 + $0x148] sm:$0xff] %v2372
    %2427 = vst [vmem:[#allocation8 + $0x150] sm:$0xff] %v2373
    %2428 = vst [vmem:[#allocation8 + $0x158] sm:$0xff] %v2374
    %2429 = vst [vmem:[#allocation8 + $0x160] sm:$0xff] %v2375
    %2430 = vst [vmem:[#allocation8 + $0x168] sm:$0xff] %v2376
    %2431 = vst [vmem:[#allocation8 + $0x170] sm:$0xff] %v2377
    %2432 = vst [vmem:[#allocation8 + $0x178] sm:$0xff] %v2378
    %2433 = vst [vmem:[#allocation8 + $0x180] sm:$0xff] %v2379
    %2434 = vst [vmem:[#allocation8 + $0x188] sm:$0xff] %v2380
    %2435 = vst [vmem:[#allocation8 + $0x190] sm:$0xff] %v2381
    %2436 = vst [vmem:[#allocation8 + $0x198] sm:$0xff] %v2382
    %2437 = vst [vmem:[#allocation8 + $0x1a0] sm:$0xff] %v2383
    %2438 = vst [vmem:[#allocation8 + $0x1a8] sm:$0xff] %v2384
    // Predicated region
    $region22: #{tpu_custom_call.1} parent=1 // pred_check
      _
    $region23: #{tpu_custom_call.1} parent=1 // pred_check_branch
      %2440 = sbr.rel (0) target = $region25
    $region24: #{tpu_custom_call.1} parent=1 // pred_region
      %2442 = vsyncadd [#allocation5], 0
      %s2443 = sshll.u32 [#allocation8], 4
      %s2444 = int_to_ptr.vmem [resolvable:$true] %s2443
      %s2445 = sshll.u32 %s3, 4
      %s2446 = int_to_ptr.hbm [resolvable:$true] %s2445
      %2451 = dma.vmem_to_hbm [thread:$0]  %s2444, 6912, %s2446, [#allocation5], 1152, 1152, 72
    $region25: #{tpu_custom_call.1} parent=1 // pred_fallthru
      _
    // Predicated region
    $region26: #{tpu_custom_call.1} parent=1 // pred_check
      _
    $region27: #{tpu_custom_call.1} parent=1 // pred_check_branch
      %2453 = sbr.rel (0) target = $region29
    $region28: #{tpu_custom_call.1} parent=1 // pred_region
      %2455 = dma.done [#allocation5], 6912
    $region29: #{tpu_custom_call.1} parent=1 // pred_fallthru
      _
    %2456 = vsyncpa [#allocation4], 1
    %2457 = vsyncpa [#allocation7], 1
    %2458 = vsyncpa [#allocation5], 1

</llo_original>
